<compile_context>
chip_gen: v5e
topology: v5e:2x2
jax: 0.10.0
libtpu: 0.0.40
codegen_flags: <defaults>
</compile_context>

<pallas_src>
import functools
import math

import jax
import jax.numpy as jnp
import numpy as np
from jax.experimental import pallas as pl
from jax.experimental.pallas import tpu as pltpu

WINDOW_SIZE = 11
SIGMA = 1.5
EPS = 1e-5
C1 = 0.01 ** 2
C2 = 0.03 ** 2

# Optional: EUP approximate reciprocal for num/den (frees VALU cycles, ~1e-3 drift).
# Off by default to stay bit-close to the PyTorch f32 reference.
USE_APPROX_RECIPROCAL = False


def _gaussian_1d(window_size, sigma):
    g = [math.exp(-((x - window_size // 2) ** 2) / float(2 * sigma ** 2))
         for x in range(window_size)]
    s = sum(g)
    return [v / s for v in g]


# Deterministic "parameter" of the module: the rank-1 gaussian window (1-D taps).
_G = _gaussian_1d(WINDOW_SIZE, SIGMA)


def _round_up(x, m):
    return ((x + m - 1) // m) * m


def _band_matrix(n_valid, n_pad, taps):
    """(n_pad, n_pad) Toeplitz band M with M[i, j] = taps[j - i + p] on |i-j| <= p,
    restricted to i, j < n_valid.  M @ x (or x @ M; taps are symmetric) realizes a
    1-D 'same' convolution with zero padding along that axis."""
    taps = np.asarray(taps, np.float32)
    p = taps.shape[0] // 2
    idx = np.arange(n_pad)
    diff = idx[None, :] - idx[:, None]          # j - i
    inband = np.abs(diff) <= p
    tap_idx = np.clip(diff + p, 0, taps.shape[0] - 1)
    m = np.where(inband, taps[tap_idx], 0.0).astype(np.float32)
    m[n_valid:, :] = 0.0
    m[:, n_valid:] = 0.0
    return m


def _pick_planes_per_step(n_planes, hh, wp):
    """Planes per grid step: fill the MXU M/K dims (~128-256 rows) for short planes
    while keeping the per-step VMEM estimate within budget (works on v7x's smaller
    VMEM as well as v5e/v6e)."""
    p = max(1, min(n_planes, 256 // hh)) if hh < 256 else 1
    budget = 24 * 1024 * 1024   # headroom under the explicit 48 MiB limit below

    def est(pp):
        ph = pp * hh
        # ~(2 inputs x 2 pipeline buffers + ~12 live f32 intermediates) + band mats
        return 64 * ph * wp + 8 * (ph * ph + wp * wp)

    while p > 1 and est(p) > budget:
        p -= 1
    return p


def _ssim_kernel(pred_ref, gt_ref, a_row_ref, a_col_ref, rmask_ref, out_ref, *, W):
    """pred/gt: (P*Hh, Wp) slab of P vertically stacked planes.
    a_row: (P*Hh, P*Hh) block-diagonal gaussian band; a_col: (Wp, Wp) band.
    rmask: (P*Hh, 1) row-validity (0/1).  out: (1, 1, Wp) per-lane partial sums."""
    x1 = pred_ref[...]
    x2 = gt_ref[...]

    # forward(): img2[img2 < eps] = 0 ; img1[img2 < eps] = 0
    low = x2 < EPS
    img2 = jnp.where(low, 0.0, x2)
    img1 = jnp.where(low, 0.0, x1)

    a_row = a_row_ref[...]
    a_col = a_col_ref[...]

    def gconv(x):
        # separable 11x11 gaussian 'same' conv == A_row @ x @ A_col  (two MXU matmuls)
        t = jnp.dot(a_row, x, preferred_element_type=jnp.float32)
        return jnp.dot(t, a_col, preferred_element_type=jnp.float32)

    mu1 = gconv(img1)
    mu2 = gconv(img2)
    mu1_sq = mu1 * mu1
    mu2_sq = mu2 * mu2
    mu1_mu2 = mu1 * mu2
    sigma1_sq = gconv(img1 * img1) - mu1_sq
    sigma2_sq = gconv(img2 * img2) - mu2_sq
    sigma12 = gconv(img1 * img2) - mu1_mu2

    num = (2.0 * mu1_mu2 + C1) * (2.0 * sigma12 + C2)
    den = (mu1_sq + mu2_sq + C1) * (sigma1_sq + sigma2_sq + C2)
    if USE_APPROX_RECIPROCAL:
        ssim_map = num * pl.reciprocal(den, approx=True)
    else:
        ssim_map = num / den

    ph, wp = ssim_map.shape
    # Alignment padding has ssim_map == 1 exactly; mask it out of the sum.
    col_ok = jax.lax.broadcasted_iota(jnp.int32, (ph, wp), 1) < W
    weighted = jnp.where(col_ok, ssim_map * rmask_ref[...], 0.0)
    # Per-lane partial sums only (sublane reduction); cross-lane + cross-step
    # reduction happens in JAX outside the kernel.
    out_ref[...] = jnp.sum(weighted, axis=0, keepdims=True).reshape(1, 1, wp)


def ssim(pred, gt, mask=None):
    """Matches SSIM(window_size=11, size_average=True, eps=1e-5).forward(pred, gt, mask).

    pred, gt: (B, C, H, W).  `mask` is accepted but unused (as in the reference
    forward)."""
    del mask  # unused by the reference forward
    B, C, H, W = pred.shape
    N = B * C
    Hh = _round_up(H, 8)
    Wp = _round_up(W, 128)
    P = _pick_planes_per_step(N, Hh, Wp)
    Npad = _round_up(N, P)
    G = Npad // P
    PH = P * Hh
    # TODO(synk): very large single planes (P == 1 with Hh*Wp f32 intermediates
    # beyond the VMEM budget) would need intra-plane H tiling with a 2*(window//2)
    # row halo; not needed for typical depth-completion resolutions.

    def prep(x):
        x = x.astype(jnp.float32).reshape(N, H, W)
        x = jnp.pad(x, ((0, Npad - N), (0, Hh - H), (0, Wp - W)))
        return x.reshape(Npad * Hh, Wp)

    pred_s = prep(pred)
    gt_s = prep(gt)

    a_row = jnp.asarray(np.kron(np.eye(P, dtype=np.float32), _band_matrix(H, Hh, _G)))
    a_col = jnp.asarray(_band_matrix(W, Wp, _G))
    rmask_np = np.zeros((Npad, Hh), np.float32)
    rmask_np[:N, :H] = 1.0
    rmask = jnp.asarray(rmask_np.reshape(Npad * Hh, 1))

    partials = pl.pallas_call(
        functools.partial(_ssim_kernel, W=W),
        out_shape=jax.ShapeDtypeStruct((G, 1, Wp), jnp.float32),
        grid=(G,),
        in_specs=[
            pl.BlockSpec((PH, Wp), lambda i: (i, 0)),      # pred slab
            pl.BlockSpec((PH, Wp), lambda i: (i, 0)),      # gt slab
            pl.BlockSpec((PH, PH), lambda i: (0, 0)),      # A_row (VMEM-resident)
            pl.BlockSpec((Wp, Wp), lambda i: (0, 0)),      # A_col (VMEM-resident)
            pl.BlockSpec((PH, 1), lambda i: (i, 0)),       # row-validity vector
        ],
        out_specs=pl.BlockSpec((1, 1, Wp), lambda i: (i, 0, 0)),
        compiler_params=pltpu.CompilerParams(
            dimension_semantics=("parallel",),             # independent per-step outputs
            vmem_limit_bytes=48 * 1024 * 1024,
        ),
    )(pred_s, gt_s, a_row, a_col, rmask)

    # size_average=True -> mean over all (B, C, H, W) elements
    return jnp.sum(partials) / float(N * H * W)


def _ssim_reference(pred, gt):
    """Independent pure-JAX reference (explicit depthwise conv via lax.conv)."""
    B, C, H, W = pred.shape
    p = WINDOW_SIZE // 2
    g = jnp.asarray(_G, jnp.float32)
    win = jnp.outer(g, g).reshape(1, 1, WINDOW_SIZE, WINDOW_SIZE)
    low = gt < EPS
    img2 = jnp.where(low, 0.0, gt).astype(jnp.float32)
    img1 = jnp.where(low, 0.0, pred).astype(jnp.float32)

    def conv(x):
        y = jax.lax.conv_general_dilated(
            x.reshape(B * C, 1, H, W), win, (1, 1), [(p, p), (p, p)],
            precision=jax.lax.Precision.HIGHEST)
        return y.reshape(B, C, H, W)

    mu1, mu2 = conv(img1), conv(img2)
    mu1_sq, mu2_sq, mu1_mu2 = mu1 * mu1, mu2 * mu2, mu1 * mu2
    s1 = conv(img1 * img1) - mu1_sq
    s2 = conv(img2 * img2) - mu2_sq
    s12 = conv(img1 * img2) - mu1_mu2
    smap = ((2 * mu1_mu2 + C1) * (2 * s12 + C2)) / ((mu1_sq + mu2_sq + C1) * (s1 + s2 + C2))
    return smap.mean()


if __name__ == "__main__":
    key = jax.random.PRNGKey(0)
    k1, k2 = jax.random.split(key)
    B, C, H, W = 2, 4, 16, 16
    # depth-like positive values; some gt pixels below eps to exercise the mask
    pred = jax.random.uniform(k1, (B, C, H, W), jnp.float32, 0.0, 2.0)
    gt = jax.random.uniform(k2, (B, C, H, W), jnp.float32, -0.1, 2.0)
    gt = jnp.maximum(gt, 0.0)

    result = jax.block_until_ready(ssim(pred, gt, mask=None))
    reference = jax.block_until_ready(_ssim_reference(pred, gt))

    assert result.shape == () and bool(jnp.isfinite(result))
    assert abs(float(result) - float(reference)) < 5e-3, (float(result), float(reference))
    print("KERNEL_OK")
</pallas_src>

<mosaic_0001>
module attributes {stable_mosaic.version = 11 : i64} {
  func.func @_ssim_kernel(%arg0: i32, %arg1: memref<128x128xf32, #tpu.memory_space<vmem>>, %arg2: memref<128x128xf32, #tpu.memory_space<vmem>>, %arg3: memref<128x128xf32, #tpu.memory_space<vmem>>, %arg4: memref<128x128xf32, #tpu.memory_space<vmem>>, %arg5: memref<128x1xf32, #tpu.memory_space<vmem>>, %arg6: memref<1x1x128xf32, #tpu.memory_space<vmem>>) attributes {dimension_semantics = [#tpu.dimension_semantics<parallel>], iteration_bounds = array<i64: 1>, scalar_prefetch = 0 : i64, scratch_operands = 0 : i64, tpu.core_type = #tpu.core_type<tc>, window_params = [{transform_indices = @transform_0, window_bounds = array<i64: 128, 128>}, {transform_indices = @transform_1, window_bounds = array<i64: 128, 128>}, {pipeline_mode = #tpu.pipeline_mode<synchronous>, transform_indices = @transform_2, window_bounds = array<i64: 128, 128>}, {pipeline_mode = #tpu.pipeline_mode<synchronous>, transform_indices = @transform_3, window_bounds = array<i64: 128, 128>}, {transform_indices = @transform_4, window_bounds = array<i64: 128, 1>}, {transform_indices = @transform_5, window_bounds = array<i64: 1, 1, 128>}]} {
    %c0 = arith.constant 0 : index
    %c0_0 = arith.constant 0 : index
    %0 = vector.load %arg1[%c0, %c0_0] : memref<128x128xf32, #tpu.memory_space<vmem>>, vector<128x128xf32>
    %c0_1 = arith.constant 0 : index
    %c0_2 = arith.constant 0 : index
    %1 = vector.load %arg2[%c0_1, %c0_2] : memref<128x128xf32, #tpu.memory_space<vmem>>, vector<128x128xf32>
    %cst = arith.constant 9.99999974E-6 : f32
    %2 = vector.broadcast %cst : f32 to vector<128x128xf32>
    %3 = arith.cmpf olt, %1, %2 : vector<128x128xf32>
    %cst_3 = arith.constant 0.000000e+00 : f32
    %4 = vector.broadcast %cst_3 : f32 to vector<128x128xf32>
    %5 = arith.select %3, %4, %1 : vector<128x128xi1>, vector<128x128xf32>
    %cst_4 = arith.constant 0.000000e+00 : f32
    %6 = vector.broadcast %cst_4 : f32 to vector<128x128xf32>
    %7 = arith.select %3, %6, %0 : vector<128x128xi1>, vector<128x128xf32>
    %c0_5 = arith.constant 0 : index
    %c0_6 = arith.constant 0 : index
    %8 = vector.load %arg3[%c0_5, %c0_6] : memref<128x128xf32, #tpu.memory_space<vmem>>, vector<128x128xf32>
    %c0_7 = arith.constant 0 : index
    %c0_8 = arith.constant 0 : index
    %9 = vector.load %arg4[%c0_7, %c0_8] : memref<128x128xf32, #tpu.memory_space<vmem>>, vector<128x128xf32>
    %cst_9 = arith.constant dense<0.000000e+00> : vector<128x128xf32>
    %10 = tpu.matmul %8, %7, %cst_9 {dimension_numbers = #tpu.dot_dimension_numbers<[1], [0], [0], [1], [0, 0, 1, 1], [], []>} : vector<128x128xf32>, vector<128x128xf32>, vector<128x128xf32> -> vector<128x128xf32>
    %cst_10 = arith.constant dense<0.000000e+00> : vector<128x128xf32>
    %11 = tpu.matmul %10, %9, %cst_10 {dimension_numbers = #tpu.dot_dimension_numbers<[1], [0], [0], [1], [0, 0, 1, 1], [], []>} : vector<128x128xf32>, vector<128x128xf32>, vector<128x128xf32> -> vector<128x128xf32>
    %cst_11 = arith.constant dense<0.000000e+00> : vector<128x128xf32>
    %12 = tpu.matmul %8, %5, %cst_11 {dimension_numbers = #tpu.dot_dimension_numbers<[1], [0], [0], [1], [0, 0, 1, 1], [], []>} : vector<128x128xf32>, vector<128x128xf32>, vector<128x128xf32> -> vector<128x128xf32>
    %cst_12 = arith.constant dense<0.000000e+00> : vector<128x128xf32>
    %13 = tpu.matmul %12, %9, %cst_12 {dimension_numbers = #tpu.dot_dimension_numbers<[1], [0], [0], [1], [0, 0, 1, 1], [], []>} : vector<128x128xf32>, vector<128x128xf32>, vector<128x128xf32> -> vector<128x128xf32>
    %14 = arith.mulf %11, %11 : vector<128x128xf32>
    %15 = arith.mulf %13, %13 : vector<128x128xf32>
    %16 = arith.mulf %11, %13 : vector<128x128xf32>
    %17 = arith.mulf %7, %7 : vector<128x128xf32>
    %cst_13 = arith.constant dense<0.000000e+00> : vector<128x128xf32>
    %18 = tpu.matmul %8, %17, %cst_13 {dimension_numbers = #tpu.dot_dimension_numbers<[1], [0], [0], [1], [0, 0, 1, 1], [], []>} : vector<128x128xf32>, vector<128x128xf32>, vector<128x128xf32> -> vector<128x128xf32>
    %cst_14 = arith.constant dense<0.000000e+00> : vector<128x128xf32>
    %19 = tpu.matmul %18, %9, %cst_14 {dimension_numbers = #tpu.dot_dimension_numbers<[1], [0], [0], [1], [0, 0, 1, 1], [], []>} : vector<128x128xf32>, vector<128x128xf32>, vector<128x128xf32> -> vector<128x128xf32>
    %20 = arith.subf %19, %14 : vector<128x128xf32>
    %21 = arith.mulf %5, %5 : vector<128x128xf32>
    %cst_15 = arith.constant dense<0.000000e+00> : vector<128x128xf32>
    %22 = tpu.matmul %8, %21, %cst_15 {dimension_numbers = #tpu.dot_dimension_numbers<[1], [0], [0], [1], [0, 0, 1, 1], [], []>} : vector<128x128xf32>, vector<128x128xf32>, vector<128x128xf32> -> vector<128x128xf32>
    %cst_16 = arith.constant dense<0.000000e+00> : vector<128x128xf32>
    %23 = tpu.matmul %22, %9, %cst_16 {dimension_numbers = #tpu.dot_dimension_numbers<[1], [0], [0], [1], [0, 0, 1, 1], [], []>} : vector<128x128xf32>, vector<128x128xf32>, vector<128x128xf32> -> vector<128x128xf32>
    %24 = arith.subf %23, %15 : vector<128x128xf32>
    %25 = arith.mulf %7, %5 : vector<128x128xf32>
    %cst_17 = arith.constant dense<0.000000e+00> : vector<128x128xf32>
    %26 = tpu.matmul %8, %25, %cst_17 {dimension_numbers = #tpu.dot_dimension_numbers<[1], [0], [0], [1], [0, 0, 1, 1], [], []>} : vector<128x128xf32>, vector<128x128xf32>, vector<128x128xf32> -> vector<128x128xf32>
    %cst_18 = arith.constant dense<0.000000e+00> : vector<128x128xf32>
    %27 = tpu.matmul %26, %9, %cst_18 {dimension_numbers = #tpu.dot_dimension_numbers<[1], [0], [0], [1], [0, 0, 1, 1], [], []>} : vector<128x128xf32>, vector<128x128xf32>, vector<128x128xf32> -> vector<128x128xf32>
    %28 = arith.subf %27, %16 : vector<128x128xf32>
    %cst_19 = arith.constant 2.000000e+00 : f32
    %29 = vector.broadcast %cst_19 : f32 to vector<128x128xf32>
    %30 = arith.mulf %29, %16 : vector<128x128xf32>
    %cst_20 = arith.constant 9.99999974E-5 : f32
    %31 = vector.broadcast %cst_20 : f32 to vector<128x128xf32>
    %32 = arith.addf %30, %31 : vector<128x128xf32>
    %cst_21 = arith.constant 2.000000e+00 : f32
    %33 = vector.broadcast %cst_21 : f32 to vector<128x128xf32>
    %34 = arith.mulf %33, %28 : vector<128x128xf32>
    %cst_22 = arith.constant 8.99999984E-4 : f32
    %35 = vector.broadcast %cst_22 : f32 to vector<128x128xf32>
    %36 = arith.addf %34, %35 : vector<128x128xf32>
    %37 = arith.mulf %32, %36 : vector<128x128xf32>
    %38 = arith.addf %14, %15 : vector<128x128xf32>
    %cst_23 = arith.constant 9.99999974E-5 : f32
    %39 = vector.broadcast %cst_23 : f32 to vector<128x128xf32>
    %40 = arith.addf %38, %39 : vector<128x128xf32>
    %41 = arith.addf %20, %24 : vector<128x128xf32>
    %cst_24 = arith.constant 8.99999984E-4 : f32
    %42 = vector.broadcast %cst_24 : f32 to vector<128x128xf32>
    %43 = arith.addf %41, %42 : vector<128x128xf32>
    %44 = arith.mulf %40, %43 : vector<128x128xf32>
    %45 = arith.divf %37, %44 : vector<128x128xf32>
    %46 = tpu.iota {dimensions = array<i32: 1>} : vector<128x128xi32>
    %c16_i32 = arith.constant 16 : i32
    %47 = vector.broadcast %c16_i32 : i32 to vector<128x128xi32>
    %48 = arith.cmpi slt, %46, %47 : vector<128x128xi32>
    %c0_25 = arith.constant 0 : index
    %c0_26 = arith.constant 0 : index
    %49 = vector.load %arg5[%c0_25, %c0_26] : memref<128x1xf32, #tpu.memory_space<vmem>>, vector<128x1xf32>
    %50 = vector.broadcast %49 : vector<128x1xf32> to vector<128x128xf32>
    %51 = arith.mulf %45, %50 : vector<128x128xf32>
    %cst_27 = arith.constant 0.000000e+00 : f32
    %52 = vector.broadcast %cst_27 : f32 to vector<128x128xf32>
    %53 = arith.select %48, %51, %52 : vector<128x128xi1>, vector<128x128xf32>
    %cst_28 = arith.constant dense<0.000000e+00> : vector<128xf32>
    %54 = vector.multi_reduction <add>, %53, %cst_28 [0] : vector<128x128xf32> to vector<128xf32>
    %55 = vector.shape_cast %54 : vector<128xf32> to vector<1x128xf32>
    %56 = vector.shape_cast %55 : vector<1x128xf32> to vector<1x1x128xf32>
    %c0_29 = arith.constant 0 : index
    %c0_30 = arith.constant 0 : index
    %c0_31 = arith.constant 0 : index
    %57 = vector.load %arg6[%c0_29, %c0_30, %c0_31] : memref<1x1x128xf32, #tpu.memory_space<vmem>>, vector<1x1x128xf32>
    tpu.vector_store %arg6[%c0_29, %c0_30, %c0_31], %56 {strides = array<i32>} : memref<1x1x128xf32, #tpu.memory_space<vmem>>, vector<1x1x128xf32>,
    return
  }
  func.func @transform_0(%arg0: i32) -> (i32, i32) {
    %c0_i32 = arith.constant 0 : i32
    %c0_i32_0 = arith.constant 0 : i32
    return %arg0, %c0_i32 : i32, i32
  }
  func.func @transform_1(%arg0: i32) -> (i32, i32) {
    %c0_i32 = arith.constant 0 : i32
    %c0_i32_0 = arith.constant 0 : i32
    return %arg0, %c0_i32 : i32, i32
  }
  func.func @transform_2(%arg0: i32) -> (i32, i32) {
    %c0_i32 = arith.constant 0 : i32
    %c0_i32_0 = arith.constant 0 : i32
    %c0_i32_1 = arith.constant 0 : i32
    return %c0_i32, %c0_i32_0 : i32, i32
  }
  func.func @transform_3(%arg0: i32) -> (i32, i32) {
    %c0_i32 = arith.constant 0 : i32
    %c0_i32_0 = arith.constant 0 : i32
    %c0_i32_1 = arith.constant 0 : i32
    return %c0_i32, %c0_i32_0 : i32, i32
  }
  func.func @transform_4(%arg0: i32) -> (i32, i32) {
    %c0_i32 = arith.constant 0 : i32
    %c0_i32_0 = arith.constant 0 : i32
    return %arg0, %c0_i32 : i32, i32
  }
  func.func @transform_5(%arg0: i32) -> (i32, i32, i32) {
    %c0_i32 = arith.constant 0 : i32
    %c0_i32_0 = arith.constant 0 : i32
    %c0_i32_1 = arith.constant 0 : i32
    return %arg0, %c0_i32, %c0_i32_0 : i32, i32, i32
  }
}

</mosaic_0001>

<llo_original>
// kernel: tpu_custom_call.1
$region0: #{tpu_custom_call.1}
  #allocation0 [shape = 'u32[]', space=smem, size = 0x4, offset = 0x4, fixed_abs, tag = 'smem constant byte address 0x4 - core index']
  #allocation1 [shape = 'u32[72,128]{1,0:T(1,128)}', space=vmem, size = 0x9000, scoped, tag = 'internal scratch']
  %s0 = inlined_call_operand.vmem [shape: f32[128,128], index: 0, kind: input, shape index: {}]
  %s1 = inlined_call_operand.hbm [shape: f32[128,128], index: 1, kind: input, shape index: {}]
  %s2 = inlined_call_operand.hbm [shape: f32[128,128], index: 2, kind: input, shape index: {}]
  %s3 = inlined_call_operand.hbm [shape: f32[128,128], index: 3, kind: input, shape index: {}]
  %s4 = inlined_call_operand.vmem [shape: f32[128,1], index: 4, kind: input, shape index: {}]
  %s5 = inlined_call_operand.hbm [shape: f32[1,1,128], index: 5, kind: output, shape index: {}]
  %s6 = sld [smem:[#allocation0]]
  $region42: #{tpu_custom_call.1} parent=0
    _
  %s8 = ssub.s32 1, %s6
  %s9 = scalar_select 0, %s8, %s6
  $region1: #{tpu_custom_call.1} parent=0
    #allocation2 [shape = 'u8[65536]{0}', space=vmem, size = 0x10000, scoped, tag = 'input window, operand 1, single buffered']
    #allocation3 [shape = 's32[1]{0}', space=sflag, size = 0x4, scoped, tag = 'scoped memory for tpu_custom_call.1']
    #allocation4 [shape = 's32[1]{0}', space=sflag, size = 0x4, scoped, tag = 'scoped memory for tpu_custom_call.1']
    #allocation5 [shape = 'u8[65536]{0}', space=vmem, size = 0x10000, scoped, tag = 'input window, operand 2, single buffered']
    #allocation6 [shape = 's32[1]{0}', space=sflag, size = 0x4, scoped, tag = 'scoped memory for tpu_custom_call.1']
    #allocation7 [shape = 'u8[65536]{0}', space=vmem, size = 0x10000, scoped, tag = 'input window, operand 3, single buffered']
    #allocation8 [shape = 'u8[512]{0}', space=vmem, size = 0x400, scoped, tag = 'output window, operand 0, single buffered']
    %10 = vsyncpa [#allocation3], 0
    %11 = vsyncpa [#allocation6], 0
    %12 = vsyncpa [#allocation4], 0
    // Predicated region
    $region2: #{tpu_custom_call.1} parent=1 // pred_check
      _
    $region3: #{tpu_custom_call.1} parent=1 // pred_check_branch
      %14 = sbr.rel (0) target = $region5
    $region4: #{tpu_custom_call.1} parent=1 // pred_region
      _
    $region5: #{tpu_custom_call.1} parent=1 // pred_fallthru
      _
    // Predicated region
    $region6: #{tpu_custom_call.1} parent=1 // pred_check
      _
    $region7: #{tpu_custom_call.1} parent=1 // pred_check_branch
      %16 = sbr.rel (0) target = $region9
    $region8: #{tpu_custom_call.1} parent=1 // pred_region
      %18 = vsyncadd [#allocation3], 0
      %s19 = sshll.u32 %s1, 4
      %s20 = int_to_ptr.hbm [resolvable:$true] %s19
      %s21 = sshll.u32 [#allocation2], 4
      %s22 = int_to_ptr.vmem [resolvable:$true] %s21
      %27 = dma.hbm_to_vmem [thread:$0]  %s20, 2048, %s22, [#allocation3], 128, 128, 8
    $region9: #{tpu_custom_call.1} parent=1 // pred_fallthru
      _
    // Predicated region
    $region10: #{tpu_custom_call.1} parent=1 // pred_check
      _
    $region11: #{tpu_custom_call.1} parent=1 // pred_check_branch
      %29 = sbr.rel (0) target = $region13
    $region12: #{tpu_custom_call.1} parent=1 // pred_region
      %31 = vsyncadd [#allocation6], 0
      %s32 = sshll.u32 %s2, 4
      %s33 = int_to_ptr.hbm [resolvable:$true] %s32
      %s34 = sshll.u32 [#allocation5], 4
      %s35 = int_to_ptr.vmem [resolvable:$true] %s34
      %40 = dma.hbm_to_vmem [thread:$0]  %s33, 2048, %s35, [#allocation6], 128, 128, 8
    $region13: #{tpu_custom_call.1} parent=1 // pred_fallthru
      _
    // Predicated region
    $region14: #{tpu_custom_call.1} parent=1 // pred_check
      _
    $region15: #{tpu_custom_call.1} parent=1 // pred_check_branch
      %42 = sbr.rel (0) target = $region17
    $region16: #{tpu_custom_call.1} parent=1 // pred_region
      %44 = vsyncadd [#allocation6], 0
      %s45 = sshll.u32 %s3, 4
      %s46 = int_to_ptr.hbm [resolvable:$true] %s45
      %s47 = sshll.u32 [#allocation7], 4
      %s48 = int_to_ptr.vmem [resolvable:$true] %s47
      %53 = dma.hbm_to_vmem [thread:$0]  %s46, 2048, %s48, [#allocation6], 128, 128, 8
    $region17: #{tpu_custom_call.1} parent=1 // pred_fallthru
      _
    // Predicated region
    $region18: #{tpu_custom_call.1} parent=1 // pred_check
      _
    $region19: #{tpu_custom_call.1} parent=1 // pred_check_branch
      %55 = sbr.rel (0) target = $region21
    $region20: #{tpu_custom_call.1} parent=1 // pred_region
      _
    $region21: #{tpu_custom_call.1} parent=1 // pred_fallthru
      _
    // Predicated region
    $region22: #{tpu_custom_call.1} parent=1 // pred_check
      _
    $region23: #{tpu_custom_call.1} parent=1 // pred_check_branch
      %57 = sbr.rel (0) target = $region25
    $region24: #{tpu_custom_call.1} parent=1 // pred_region
      %59 = dma.done [#allocation3], 2048
    $region25: #{tpu_custom_call.1} parent=1 // pred_fallthru
      _
    // Predicated region
    $region26: #{tpu_custom_call.1} parent=1 // pred_check
      _
    $region27: #{tpu_custom_call.1} parent=1 // pred_check_branch
      %61 = sbr.rel (0) target = $region29
    $region28: #{tpu_custom_call.1} parent=1 // pred_region
      %63 = dma.done [#allocation6], 2048
    $region29: #{tpu_custom_call.1} parent=1 // pred_fallthru
      _
    // Predicated region
    $region30: #{tpu_custom_call.1} parent=1 // pred_check
      _
    $region31: #{tpu_custom_call.1} parent=1 // pred_check_branch
      %65 = sbr.rel (0) target = $region33
    $region32: #{tpu_custom_call.1} parent=1 // pred_region
      %67 = dma.done [#allocation6], 2048
    $region33: #{tpu_custom_call.1} parent=1 // pred_fallthru
      _
    %v68 = vld [vmem:[%s0] sm:$0xff]
    %v69 = vld [vmem:[%s0 + $0x8] sm:$0xff]
    %v70 = vld [vmem:[%s0 + $0x10] sm:$0xff]
    %v71 = vld [vmem:[%s0 + $0x18] sm:$0xff]
    %v72 = vld [vmem:[%s0 + $0x20] sm:$0xff]
    %v73 = vld [vmem:[%s0 + $0x28] sm:$0xff]
    %v74 = vld [vmem:[%s0 + $0x30] sm:$0xff]
    %v75 = vld [vmem:[%s0 + $0x38] sm:$0xff]
    %v76 = vld [vmem:[%s0 + $0x40] sm:$0xff]
    %v77 = vld [vmem:[%s0 + $0x48] sm:$0xff]
    %v78 = vld [vmem:[%s0 + $0x50] sm:$0xff]
    %v79 = vld [vmem:[%s0 + $0x58] sm:$0xff]
    %v80 = vld [vmem:[%s0 + $0x60] sm:$0xff]
    %v81 = vld [vmem:[%s0 + $0x68] sm:$0xff]
    %v82 = vld [vmem:[%s0 + $0x70] sm:$0xff]
    %v83 = vld [vmem:[%s0 + $0x78] sm:$0xff]
    %v84 = vld [vmem:[#allocation2] sm:$0xff]
    %v85 = vld [vmem:[#allocation2 + $0x8] sm:$0xff]
    %v86 = vld [vmem:[#allocation2 + $0x10] sm:$0xff]
    %v87 = vld [vmem:[#allocation2 + $0x18] sm:$0xff]
    %v88 = vld [vmem:[#allocation2 + $0x20] sm:$0xff]
    %v89 = vld [vmem:[#allocation2 + $0x28] sm:$0xff]
    %v90 = vld [vmem:[#allocation2 + $0x30] sm:$0xff]
    %v91 = vld [vmem:[#allocation2 + $0x38] sm:$0xff]
    %v92 = vld [vmem:[#allocation2 + $0x40] sm:$0xff]
    %v93 = vld [vmem:[#allocation2 + $0x48] sm:$0xff]
    %v94 = vld [vmem:[#allocation2 + $0x50] sm:$0xff]
    %v95 = vld [vmem:[#allocation2 + $0x58] sm:$0xff]
    %v96 = vld [vmem:[#allocation2 + $0x60] sm:$0xff]
    %v97 = vld [vmem:[#allocation2 + $0x68] sm:$0xff]
    %v98 = vld [vmem:[#allocation2 + $0x70] sm:$0xff]
    %v99 = vld [vmem:[#allocation2 + $0x78] sm:$0xff]
    %vm100 = vcmp.lt.f32.partialorder %v84, 1e-05
    %vm101 = vcmp.lt.f32.partialorder %v85, 1e-05
    %vm102 = vcmp.lt.f32.partialorder %v86, 1e-05
    %vm103 = vcmp.lt.f32.partialorder %v87, 1e-05
    %vm104 = vcmp.lt.f32.partialorder %v88, 1e-05
    %vm105 = vcmp.lt.f32.partialorder %v89, 1e-05
    %vm106 = vcmp.lt.f32.partialorder %v90, 1e-05
    %vm107 = vcmp.lt.f32.partialorder %v91, 1e-05
    %vm108 = vcmp.lt.f32.partialorder %v92, 1e-05
    %vm109 = vcmp.lt.f32.partialorder %v93, 1e-05
    %vm110 = vcmp.lt.f32.partialorder %v94, 1e-05
    %vm111 = vcmp.lt.f32.partialorder %v95, 1e-05
    %vm112 = vcmp.lt.f32.partialorder %v96, 1e-05
    %vm113 = vcmp.lt.f32.partialorder %v97, 1e-05
    %vm114 = vcmp.lt.f32.partialorder %v98, 1e-05
    %vm115 = vcmp.lt.f32.partialorder %v99, 1e-05
    %v116 = vsel %vm100, 0.0, %v84
    %v117 = vsel %vm101, 0.0, %v85
    %v118 = vsel %vm102, 0.0, %v86
    %v119 = vsel %vm103, 0.0, %v87
    %v120 = vsel %vm104, 0.0, %v88
    %v121 = vsel %vm105, 0.0, %v89
    %v122 = vsel %vm106, 0.0, %v90
    %v123 = vsel %vm107, 0.0, %v91
    %v124 = vsel %vm108, 0.0, %v92
    %v125 = vsel %vm109, 0.0, %v93
    %v126 = vsel %vm110, 0.0, %v94
    %v127 = vsel %vm111, 0.0, %v95
    %v128 = vsel %vm112, 0.0, %v96
    %v129 = vsel %vm113, 0.0, %v97
    %v130 = vsel %vm114, 0.0, %v98
    %v131 = vsel %vm115, 0.0, %v99
    %v132 = vsel %vm100, 0.0, %v68
    %v133 = vsel %vm101, 0.0, %v69
    %v134 = vsel %vm102, 0.0, %v70
    %v135 = vsel %vm103, 0.0, %v71
    %v136 = vsel %vm104, 0.0, %v72
    %v137 = vsel %vm105, 0.0, %v73
    %v138 = vsel %vm106, 0.0, %v74
    %v139 = vsel %vm107, 0.0, %v75
    %v140 = vsel %vm108, 0.0, %v76
    %v141 = vsel %vm109, 0.0, %v77
    %v142 = vsel %vm110, 0.0, %v78
    %v143 = vsel %vm111, 0.0, %v79
    %v144 = vsel %vm112, 0.0, %v80
    %v145 = vsel %vm113, 0.0, %v81
    %v146 = vsel %vm114, 0.0, %v82
    %v147 = vsel %vm115, 0.0, %v83
    %v148 = vld [vmem:[#allocation5] sm:$0xff]
    %v149 = vld [vmem:[#allocation5 + $0x8] sm:$0xff]
    %v150 = vld [vmem:[#allocation5 + $0x10] sm:$0xff]
    %v151 = vld [vmem:[#allocation5 + $0x18] sm:$0xff]
    %v152 = vld [vmem:[#allocation5 + $0x20] sm:$0xff]
    %v153 = vld [vmem:[#allocation5 + $0x28] sm:$0xff]
    %v154 = vld [vmem:[#allocation5 + $0x30] sm:$0xff]
    %v155 = vld [vmem:[#allocation5 + $0x38] sm:$0xff]
    %v156 = vld [vmem:[#allocation5 + $0x40] sm:$0xff]
    %v157 = vld [vmem:[#allocation5 + $0x48] sm:$0xff]
    %v158 = vld [vmem:[#allocation5 + $0x50] sm:$0xff]
    %v159 = vld [vmem:[#allocation5 + $0x58] sm:$0xff]
    %v160 = vld [vmem:[#allocation5 + $0x60] sm:$0xff]
    %v161 = vld [vmem:[#allocation5 + $0x68] sm:$0xff]
    %v162 = vld [vmem:[#allocation5 + $0x70] sm:$0xff]
    %v163 = vld [vmem:[#allocation5 + $0x78] sm:$0xff]
    %v164 = vld [vmem:[#allocation7] sm:$0xff]
    %v165 = vld [vmem:[#allocation7 + $0x8] sm:$0xff]
    %v166 = vld [vmem:[#allocation7 + $0x10] sm:$0xff]
    %v167 = vld [vmem:[#allocation7 + $0x18] sm:$0xff]
    %v168 = vld [vmem:[#allocation7 + $0x20] sm:$0xff]
    %v169 = vld [vmem:[#allocation7 + $0x28] sm:$0xff]
    %v170 = vld [vmem:[#allocation7 + $0x30] sm:$0xff]
    %v171 = vld [vmem:[#allocation7 + $0x38] sm:$0xff]
    %v172 = vld [vmem:[#allocation7 + $0x40] sm:$0xff]
    %v173 = vld [vmem:[#allocation7 + $0x48] sm:$0xff]
    %v174 = vld [vmem:[#allocation7 + $0x50] sm:$0xff]
    %v175 = vld [vmem:[#allocation7 + $0x58] sm:$0xff]
    %v176 = vld [vmem:[#allocation7 + $0x60] sm:$0xff]
    %v177 = vld [vmem:[#allocation7 + $0x68] sm:$0xff]
    %v178 = vld [vmem:[#allocation7 + $0x70] sm:$0xff]
    %v179 = vld [vmem:[#allocation7 + $0x78] sm:$0xff]
    %180 = vmatpush.msra.mxu0 %v147
    %181 = vmatpush.msra.mxu0 %v146
    %182 = vmatpush.msra.mxu0 %v145
    %183 = vmatpush.msra.mxu0 %v144
    %184 = vmatpush.msra.mxu0 %v143
    %185 = vmatpush.msra.mxu0 %v142
    %186 = vmatpush.msra.mxu0 %v141
    %187 = vmatpush.msra.mxu0 %v140
    %188 = vmatpush.msra.mxu0 %v139
    %189 = vmatpush.msra.mxu0 %v138
    %190 = vmatpush.msra.mxu0 %v137
    %191 = vmatpush.msra.mxu0 %v136
    %192 = vmatpush.msra.mxu0 %v135
    %193 = vmatpush.msra.mxu0 %v134
    %194 = vmatpush.msra.mxu0 %v133
    %195 = vmatpush.msra.mxu0 %v132
    %196 = vmatmul.f32.gmra.mxu0 %v148
    %v197 = vpop.f32.mrf.mxu0
    %v198 = vadd.f32 0.0, %v197
    %199 = vmatmul.f32.gmra.mxu0 %v149
    %v200 = vpop.f32.mrf.mxu0
    %v201 = vadd.f32 0.0, %v200
    %202 = vmatmul.f32.gmra.mxu0 %v150
    %v203 = vpop.f32.mrf.mxu0
    %v204 = vadd.f32 0.0, %v203
    %205 = vmatmul.f32.gmra.mxu0 %v151
    %v206 = vpop.f32.mrf.mxu0
    %v207 = vadd.f32 0.0, %v206
    %208 = vmatmul.f32.gmra.mxu0 %v152
    %v209 = vpop.f32.mrf.mxu0
    %v210 = vadd.f32 0.0, %v209
    %211 = vmatmul.f32.gmra.mxu0 %v153
    %v212 = vpop.f32.mrf.mxu0
    %v213 = vadd.f32 0.0, %v212
    %214 = vmatmul.f32.gmra.mxu0 %v154
    %v215 = vpop.f32.mrf.mxu0
    %v216 = vadd.f32 0.0, %v215
    %217 = vmatmul.f32.gmra.mxu0 %v155
    %v218 = vpop.f32.mrf.mxu0
    %v219 = vadd.f32 0.0, %v218
    %220 = vmatmul.f32.gmra.mxu0 %v156
    %v221 = vpop.f32.mrf.mxu0
    %v222 = vadd.f32 0.0, %v221
    %223 = vmatmul.f32.gmra.mxu0 %v157
    %v224 = vpop.f32.mrf.mxu0
    %v225 = vadd.f32 0.0, %v224
    %226 = vmatmul.f32.gmra.mxu0 %v158
    %v227 = vpop.f32.mrf.mxu0
    %v228 = vadd.f32 0.0, %v227
    %229 = vmatmul.f32.gmra.mxu0 %v159
    %v230 = vpop.f32.mrf.mxu0
    %v231 = vadd.f32 0.0, %v230
    %232 = vmatmul.f32.gmra.mxu0 %v160
    %v233 = vpop.f32.mrf.mxu0
    %v234 = vadd.f32 0.0, %v233
    %235 = vmatmul.f32.gmra.mxu0 %v161
    %v236 = vpop.f32.mrf.mxu0
    %v237 = vadd.f32 0.0, %v236
    %238 = vmatmul.f32.gmra.mxu0 %v162
    %v239 = vpop.f32.mrf.mxu0
    %v240 = vadd.f32 0.0, %v239
    %241 = vmatmul.f32.gmra.mxu0 %v163
    %v242 = vpop.f32.mrf.mxu0
    %v243 = vadd.f32 0.0, %v242
    %244 = vdwg.mxu0
    %245 = vmatpush.msra.mxu0 %v179
    %246 = vmatpush.msra.mxu0 %v178
    %247 = vmatpush.msra.mxu0 %v177
    %248 = vmatpush.msra.mxu0 %v176
    %249 = vmatpush.msra.mxu0 %v175
    %250 = vmatpush.msra.mxu0 %v174
    %251 = vmatpush.msra.mxu0 %v173
    %252 = vmatpush.msra.mxu0 %v172
    %253 = vmatpush.msra.mxu0 %v171
    %254 = vmatpush.msra.mxu0 %v170
    %255 = vmatpush.msra.mxu0 %v169
    %256 = vmatpush.msra.mxu0 %v168
    %257 = vmatpush.msra.mxu0 %v167
    %258 = vmatpush.msra.mxu0 %v166
    %259 = vmatpush.msra.mxu0 %v165
    %260 = vmatpush.msra.mxu0 %v164
    %261 = vmatmul.f32.gmra.mxu0 %v198
    %v262 = vpop.f32.mrf.mxu0
    %v263 = vadd.f32 0.0, %v262
    %264 = vmatmul.f32.gmra.mxu0 %v201
    %v265 = vpop.f32.mrf.mxu0
    %v266 = vadd.f32 0.0, %v265
    %267 = vmatmul.f32.gmra.mxu0 %v204
    %v268 = vpop.f32.mrf.mxu0
    %v269 = vadd.f32 0.0, %v268
    %270 = vmatmul.f32.gmra.mxu0 %v207
    %v271 = vpop.f32.mrf.mxu0
    %v272 = vadd.f32 0.0, %v271
    %273 = vmatmul.f32.gmra.mxu0 %v210
    %v274 = vpop.f32.mrf.mxu0
    %v275 = vadd.f32 0.0, %v274
    %276 = vmatmul.f32.gmra.mxu0 %v213
    %v277 = vpop.f32.mrf.mxu0
    %v278 = vadd.f32 0.0, %v277
    %279 = vmatmul.f32.gmra.mxu0 %v216
    %v280 = vpop.f32.mrf.mxu0
    %v281 = vadd.f32 0.0, %v280
    %282 = vmatmul.f32.gmra.mxu0 %v219
    %v283 = vpop.f32.mrf.mxu0
    %v284 = vadd.f32 0.0, %v283
    %285 = vmatmul.f32.gmra.mxu0 %v222
    %v286 = vpop.f32.mrf.mxu0
    %v287 = vadd.f32 0.0, %v286
    %288 = vmatmul.f32.gmra.mxu0 %v225
    %v289 = vpop.f32.mrf.mxu0
    %v290 = vadd.f32 0.0, %v289
    %291 = vmatmul.f32.gmra.mxu0 %v228
    %v292 = vpop.f32.mrf.mxu0
    %v293 = vadd.f32 0.0, %v292
    %294 = vmatmul.f32.gmra.mxu0 %v231
    %v295 = vpop.f32.mrf.mxu0
    %v296 = vadd.f32 0.0, %v295
    %297 = vmatmul.f32.gmra.mxu0 %v234
    %v298 = vpop.f32.mrf.mxu0
    %v299 = vadd.f32 0.0, %v298
    %300 = vmatmul.f32.gmra.mxu0 %v237
    %v301 = vpop.f32.mrf.mxu0
    %v302 = vadd.f32 0.0, %v301
    %303 = vmatmul.f32.gmra.mxu0 %v240
    %v304 = vpop.f32.mrf.mxu0
    %v305 = vadd.f32 0.0, %v304
    %306 = vmatmul.f32.gmra.mxu0 %v243
    %v307 = vpop.f32.mrf.mxu0
    %v308 = vadd.f32 0.0, %v307
    %309 = vdwg.mxu0
    %310 = vmatpush.msra.mxu0 %v131
    %311 = vmatpush.msra.mxu0 %v130
    %312 = vmatpush.msra.mxu0 %v129
    %313 = vmatpush.msra.mxu0 %v128
    %314 = vmatpush.msra.mxu0 %v127
    %315 = vmatpush.msra.mxu0 %v126
    %316 = vmatpush.msra.mxu0 %v125
    %317 = vmatpush.msra.mxu0 %v124
    %318 = vmatpush.msra.mxu0 %v123
    %319 = vmatpush.msra.mxu0 %v122
    %320 = vmatpush.msra.mxu0 %v121
    %321 = vmatpush.msra.mxu0 %v120
    %322 = vmatpush.msra.mxu0 %v119
    %323 = vmatpush.msra.mxu0 %v118
    %324 = vmatpush.msra.mxu0 %v117
    %325 = vmatpush.msra.mxu0 %v116
    %326 = vmatmul.f32.gmra.mxu0 %v148
    %v327 = vpop.f32.mrf.mxu0
    %v328 = vadd.f32 0.0, %v327
    %329 = vmatmul.f32.gmra.mxu0 %v149
    %v330 = vpop.f32.mrf.mxu0
    %v331 = vadd.f32 0.0, %v330
    %332 = vmatmul.f32.gmra.mxu0 %v150
    %v333 = vpop.f32.mrf.mxu0
    %v334 = vadd.f32 0.0, %v333
    %335 = vmatmul.f32.gmra.mxu0 %v151
    %v336 = vpop.f32.mrf.mxu0
    %v337 = vadd.f32 0.0, %v336
    %338 = vmatmul.f32.gmra.mxu0 %v152
    %v339 = vpop.f32.mrf.mxu0
    %v340 = vadd.f32 0.0, %v339
    %341 = vmatmul.f32.gmra.mxu0 %v153
    %v342 = vpop.f32.mrf.mxu0
    %v343 = vadd.f32 0.0, %v342
    %344 = vmatmul.f32.gmra.mxu0 %v154
    %v345 = vpop.f32.mrf.mxu0
    %v346 = vadd.f32 0.0, %v345
    %347 = vmatmul.f32.gmra.mxu0 %v155
    %v348 = vpop.f32.mrf.mxu0
    %v349 = vadd.f32 0.0, %v348
    %350 = vmatmul.f32.gmra.mxu0 %v156
    %v351 = vpop.f32.mrf.mxu0
    %v352 = vadd.f32 0.0, %v351
    %353 = vmatmul.f32.gmra.mxu0 %v157
    %v354 = vpop.f32.mrf.mxu0
    %v355 = vadd.f32 0.0, %v354
    %356 = vmatmul.f32.gmra.mxu0 %v158
    %v357 = vpop.f32.mrf.mxu0
    %v358 = vadd.f32 0.0, %v357
    %359 = vmatmul.f32.gmra.mxu0 %v159
    %v360 = vpop.f32.mrf.mxu0
    %v361 = vadd.f32 0.0, %v360
    %362 = vmatmul.f32.gmra.mxu0 %v160
    %v363 = vpop.f32.mrf.mxu0
    %v364 = vadd.f32 0.0, %v363
    %365 = vmatmul.f32.gmra.mxu0 %v161
    %v366 = vpop.f32.mrf.mxu0
    %v367 = vadd.f32 0.0, %v366
    %368 = vmatmul.f32.gmra.mxu0 %v162
    %v369 = vpop.f32.mrf.mxu0
    %v370 = vadd.f32 0.0, %v369
    %371 = vmatmul.f32.gmra.mxu0 %v163
    %v372 = vpop.f32.mrf.mxu0
    %v373 = vadd.f32 0.0, %v372
    %374 = vdwg.mxu0
    %375 = vmatpush.msra.mxu0 %v179
    %376 = vmatpush.msra.mxu0 %v178
    %377 = vmatpush.msra.mxu0 %v177
    %378 = vmatpush.msra.mxu0 %v176
    %379 = vmatpush.msra.mxu0 %v175
    %380 = vmatpush.msra.mxu0 %v174
    %381 = vmatpush.msra.mxu0 %v173
    %382 = vmatpush.msra.mxu0 %v172
    %383 = vmatpush.msra.mxu0 %v171
    %384 = vmatpush.msra.mxu0 %v170
    %385 = vmatpush.msra.mxu0 %v169
    %386 = vmatpush.msra.mxu0 %v168
    %387 = vmatpush.msra.mxu0 %v167
    %388 = vmatpush.msra.mxu0 %v166
    %389 = vmatpush.msra.mxu0 %v165
    %390 = vmatpush.msra.mxu0 %v164
    %391 = vmatmul.f32.gmra.mxu0 %v328
    %v392 = vpop.f32.mrf.mxu0
    %v393 = vadd.f32 0.0, %v392
    %394 = vmatmul.f32.gmra.mxu0 %v331
    %v395 = vpop.f32.mrf.mxu0
    %v396 = vadd.f32 0.0, %v395
    %397 = vmatmul.f32.gmra.mxu0 %v334
    %v398 = vpop.f32.mrf.mxu0
    %v399 = vadd.f32 0.0, %v398
    %400 = vmatmul.f32.gmra.mxu0 %v337
    %v401 = vpop.f32.mrf.mxu0
    %v402 = vadd.f32 0.0, %v401
    %403 = vmatmul.f32.gmra.mxu0 %v340
    %v404 = vpop.f32.mrf.mxu0
    %v405 = vadd.f32 0.0, %v404
    %406 = vmatmul.f32.gmra.mxu0 %v343
    %v407 = vpop.f32.mrf.mxu0
    %v408 = vadd.f32 0.0, %v407
    %409 = vmatmul.f32.gmra.mxu0 %v346
    %v410 = vpop.f32.mrf.mxu0
    %v411 = vadd.f32 0.0, %v410
    %412 = vmatmul.f32.gmra.mxu0 %v349
    %v413 = vpop.f32.mrf.mxu0
    %v414 = vadd.f32 0.0, %v413
    %415 = vmatmul.f32.gmra.mxu0 %v352
    %v416 = vpop.f32.mrf.mxu0
    %v417 = vadd.f32 0.0, %v416
    %418 = vmatmul.f32.gmra.mxu0 %v355
    %v419 = vpop.f32.mrf.mxu0
    %v420 = vadd.f32 0.0, %v419
    %421 = vmatmul.f32.gmra.mxu0 %v358
    %v422 = vpop.f32.mrf.mxu0
    %v423 = vadd.f32 0.0, %v422
    %424 = vmatmul.f32.gmra.mxu0 %v361
    %v425 = vpop.f32.mrf.mxu0
    %v426 = vadd.f32 0.0, %v425
    %427 = vmatmul.f32.gmra.mxu0 %v364
    %v428 = vpop.f32.mrf.mxu0
    %v429 = vadd.f32 0.0, %v428
    %430 = vmatmul.f32.gmra.mxu0 %v367
    %v431 = vpop.f32.mrf.mxu0
    %v432 = vadd.f32 0.0, %v431
    %433 = vmatmul.f32.gmra.mxu0 %v370
    %v434 = vpop.f32.mrf.mxu0
    %v435 = vadd.f32 0.0, %v434
    %436 = vmatmul.f32.gmra.mxu0 %v373
    %v437 = vpop.f32.mrf.mxu0
    %v438 = vadd.f32 0.0, %v437
    %439 = vdwg.mxu0
    %v440 = vmul.f32 %v263, %v263
    %v441 = vmul.f32 %v266, %v266
    %v442 = vmul.f32 %v269, %v269
    %v443 = vmul.f32 %v272, %v272
    %v444 = vmul.f32 %v275, %v275
    %v445 = vmul.f32 %v278, %v278
    %v446 = vmul.f32 %v281, %v281
    %v447 = vmul.f32 %v284, %v284
    %v448 = vmul.f32 %v287, %v287
    %v449 = vmul.f32 %v290, %v290
    %v450 = vmul.f32 %v293, %v293
    %v451 = vmul.f32 %v296, %v296
    %v452 = vmul.f32 %v299, %v299
    %v453 = vmul.f32 %v302, %v302
    %v454 = vmul.f32 %v305, %v305
    %v455 = vmul.f32 %v308, %v308
    %v456 = vmul.f32 %v393, %v393
    %v457 = vmul.f32 %v396, %v396
    %v458 = vmul.f32 %v399, %v399
    %v459 = vmul.f32 %v402, %v402
    %v460 = vmul.f32 %v405, %v405
    %v461 = vmul.f32 %v408, %v408
    %v462 = vmul.f32 %v411, %v411
    %v463 = vmul.f32 %v414, %v414
    %v464 = vmul.f32 %v417, %v417
    %v465 = vmul.f32 %v420, %v420
    %v466 = vmul.f32 %v423, %v423
    %v467 = vmul.f32 %v426, %v426
    %v468 = vmul.f32 %v429, %v429
    %v469 = vmul.f32 %v432, %v432
    %v470 = vmul.f32 %v435, %v435
    %v471 = vmul.f32 %v438, %v438
    %v472 = vmul.f32 %v263, %v393
    %v473 = vmul.f32 %v266, %v396
    %v474 = vmul.f32 %v269, %v399
    %v475 = vmul.f32 %v272, %v402
    %v476 = vmul.f32 %v275, %v405
    %v477 = vmul.f32 %v278, %v408
    %v478 = vmul.f32 %v281, %v411
    %v479 = vmul.f32 %v284, %v414
    %v480 = vmul.f32 %v287, %v417
    %v481 = vmul.f32 %v290, %v420
    %v482 = vmul.f32 %v293, %v423
    %v483 = vmul.f32 %v296, %v426
    %v484 = vmul.f32 %v299, %v429
    %v485 = vmul.f32 %v302, %v432
    %v486 = vmul.f32 %v305, %v435
    %v487 = vmul.f32 %v308, %v438
    %v488 = vmul.f32 %v132, %v132
    %v489 = vmul.f32 %v133, %v133
    %v490 = vmul.f32 %v134, %v134
    %v491 = vmul.f32 %v135, %v135
    %v492 = vmul.f32 %v136, %v136
    %v493 = vmul.f32 %v137, %v137
    %v494 = vmul.f32 %v138, %v138
    %v495 = vmul.f32 %v139, %v139
    %v496 = vmul.f32 %v140, %v140
    %v497 = vmul.f32 %v141, %v141
    %v498 = vmul.f32 %v142, %v142
    %v499 = vmul.f32 %v143, %v143
    %v500 = vmul.f32 %v144, %v144
    %v501 = vmul.f32 %v145, %v145
    %v502 = vmul.f32 %v146, %v146
    %v503 = vmul.f32 %v147, %v147
    %504 = vmatpush.msra.mxu0 %v503
    %505 = vmatpush.msra.mxu0 %v502
    %506 = vmatpush.msra.mxu0 %v501
    %507 = vmatpush.msra.mxu0 %v500
    %508 = vmatpush.msra.mxu0 %v499
    %509 = vmatpush.msra.mxu0 %v498
    %510 = vmatpush.msra.mxu0 %v497
    %511 = vmatpush.msra.mxu0 %v496
    %512 = vmatpush.msra.mxu0 %v495
    %513 = vmatpush.msra.mxu0 %v494
    %514 = vmatpush.msra.mxu0 %v493
    %515 = vmatpush.msra.mxu0 %v492
    %516 = vmatpush.msra.mxu0 %v491
    %517 = vmatpush.msra.mxu0 %v490
    %518 = vmatpush.msra.mxu0 %v489
    %519 = vmatpush.msra.mxu0 %v488
    %520 = vmatmul.f32.gmra.mxu0 %v148
    %v521 = vpop.f32.mrf.mxu0
    %v522 = vadd.f32 0.0, %v521
    %523 = vmatmul.f32.gmra.mxu0 %v149
    %v524 = vpop.f32.mrf.mxu0
    %v525 = vadd.f32 0.0, %v524
    %526 = vmatmul.f32.gmra.mxu0 %v150
    %v527 = vpop.f32.mrf.mxu0
    %v528 = vadd.f32 0.0, %v527
    %529 = vmatmul.f32.gmra.mxu0 %v151
    %v530 = vpop.f32.mrf.mxu0
    %v531 = vadd.f32 0.0, %v530
    %532 = vmatmul.f32.gmra.mxu0 %v152
    %v533 = vpop.f32.mrf.mxu0
    %v534 = vadd.f32 0.0, %v533
    %535 = vmatmul.f32.gmra.mxu0 %v153
    %v536 = vpop.f32.mrf.mxu0
    %v537 = vadd.f32 0.0, %v536
    %538 = vmatmul.f32.gmra.mxu0 %v154
    %v539 = vpop.f32.mrf.mxu0
    %v540 = vadd.f32 0.0, %v539
    %541 = vmatmul.f32.gmra.mxu0 %v155
    %v542 = vpop.f32.mrf.mxu0
    %v543 = vadd.f32 0.0, %v542
    %544 = vmatmul.f32.gmra.mxu0 %v156
    %v545 = vpop.f32.mrf.mxu0
    %v546 = vadd.f32 0.0, %v545
    %547 = vmatmul.f32.gmra.mxu0 %v157
    %v548 = vpop.f32.mrf.mxu0
    %v549 = vadd.f32 0.0, %v548
    %550 = vmatmul.f32.gmra.mxu0 %v158
    %v551 = vpop.f32.mrf.mxu0
    %v552 = vadd.f32 0.0, %v551
    %553 = vmatmul.f32.gmra.mxu0 %v159
    %v554 = vpop.f32.mrf.mxu0
    %v555 = vadd.f32 0.0, %v554
    %556 = vmatmul.f32.gmra.mxu0 %v160
    %v557 = vpop.f32.mrf.mxu0
    %v558 = vadd.f32 0.0, %v557
    %559 = vmatmul.f32.gmra.mxu0 %v161
    %v560 = vpop.f32.mrf.mxu0
    %v561 = vadd.f32 0.0, %v560
    %562 = vmatmul.f32.gmra.mxu0 %v162
    %v563 = vpop.f32.mrf.mxu0
    %v564 = vadd.f32 0.0, %v563
    %565 = vmatmul.f32.gmra.mxu0 %v163
    %v566 = vpop.f32.mrf.mxu0
    %v567 = vadd.f32 0.0, %v566
    %568 = vdwg.mxu0
    %569 = vmatpush.msra.mxu0 %v179
    %570 = vmatpush.msra.mxu0 %v178
    %571 = vmatpush.msra.mxu0 %v177
    %572 = vmatpush.msra.mxu0 %v176
    %573 = vmatpush.msra.mxu0 %v175
    %574 = vmatpush.msra.mxu0 %v174
    %575 = vmatpush.msra.mxu0 %v173
    %576 = vmatpush.msra.mxu0 %v172
    %577 = vmatpush.msra.mxu0 %v171
    %578 = vmatpush.msra.mxu0 %v170
    %579 = vmatpush.msra.mxu0 %v169
    %580 = vmatpush.msra.mxu0 %v168
    %581 = vmatpush.msra.mxu0 %v167
    %582 = vmatpush.msra.mxu0 %v166
    %583 = vmatpush.msra.mxu0 %v165
    %584 = vmatpush.msra.mxu0 %v164
    %585 = vmatmul.f32.gmra.mxu0 %v522
    %v586 = vpop.f32.mrf.mxu0
    %v587 = vadd.f32 0.0, %v586
    %588 = vmatmul.f32.gmra.mxu0 %v525
    %v589 = vpop.f32.mrf.mxu0
    %v590 = vadd.f32 0.0, %v589
    %591 = vmatmul.f32.gmra.mxu0 %v528
    %v592 = vpop.f32.mrf.mxu0
    %v593 = vadd.f32 0.0, %v592
    %594 = vmatmul.f32.gmra.mxu0 %v531
    %v595 = vpop.f32.mrf.mxu0
    %v596 = vadd.f32 0.0, %v595
    %597 = vmatmul.f32.gmra.mxu0 %v534
    %v598 = vpop.f32.mrf.mxu0
    %v599 = vadd.f32 0.0, %v598
    %600 = vmatmul.f32.gmra.mxu0 %v537
    %v601 = vpop.f32.mrf.mxu0
    %v602 = vadd.f32 0.0, %v601
    %603 = vmatmul.f32.gmra.mxu0 %v540
    %v604 = vpop.f32.mrf.mxu0
    %v605 = vadd.f32 0.0, %v604
    %606 = vmatmul.f32.gmra.mxu0 %v543
    %v607 = vpop.f32.mrf.mxu0
    %v608 = vadd.f32 0.0, %v607
    %609 = vmatmul.f32.gmra.mxu0 %v546
    %v610 = vpop.f32.mrf.mxu0
    %v611 = vadd.f32 0.0, %v610
    %612 = vmatmul.f32.gmra.mxu0 %v549
    %v613 = vpop.f32.mrf.mxu0
    %v614 = vadd.f32 0.0, %v613
    %615 = vmatmul.f32.gmra.mxu0 %v552
    %v616 = vpop.f32.mrf.mxu0
    %v617 = vadd.f32 0.0, %v616
    %618 = vmatmul.f32.gmra.mxu0 %v555
    %v619 = vpop.f32.mrf.mxu0
    %v620 = vadd.f32 0.0, %v619
    %621 = vmatmul.f32.gmra.mxu0 %v558
    %v622 = vpop.f32.mrf.mxu0
    %v623 = vadd.f32 0.0, %v622
    %624 = vmatmul.f32.gmra.mxu0 %v561
    %v625 = vpop.f32.mrf.mxu0
    %v626 = vadd.f32 0.0, %v625
    %627 = vmatmul.f32.gmra.mxu0 %v564
    %v628 = vpop.f32.mrf.mxu0
    %v629 = vadd.f32 0.0, %v628
    %630 = vmatmul.f32.gmra.mxu0 %v567
    %v631 = vpop.f32.mrf.mxu0
    %v632 = vadd.f32 0.0, %v631
    %633 = vdwg.mxu0
    %v634 = vsub.f32 %v587, %v440
    %v635 = vsub.f32 %v590, %v441
    %v636 = vsub.f32 %v593, %v442
    %v637 = vsub.f32 %v596, %v443
    %v638 = vsub.f32 %v599, %v444
    %v639 = vsub.f32 %v602, %v445
    %v640 = vsub.f32 %v605, %v446
    %v641 = vsub.f32 %v608, %v447
    %v642 = vsub.f32 %v611, %v448
    %v643 = vsub.f32 %v614, %v449
    %v644 = vsub.f32 %v617, %v450
    %v645 = vsub.f32 %v620, %v451
    %v646 = vsub.f32 %v623, %v452
    %v647 = vsub.f32 %v626, %v453
    %v648 = vsub.f32 %v629, %v454
    %v649 = vsub.f32 %v632, %v455
    %v650 = vmul.f32 %v116, %v116
    %v651 = vmul.f32 %v117, %v117
    %v652 = vmul.f32 %v118, %v118
    %v653 = vmul.f32 %v119, %v119
    %v654 = vmul.f32 %v120, %v120
    %v655 = vmul.f32 %v121, %v121
    %v656 = vmul.f32 %v122, %v122
    %v657 = vmul.f32 %v123, %v123
    %v658 = vmul.f32 %v124, %v124
    %v659 = vmul.f32 %v125, %v125
    %v660 = vmul.f32 %v126, %v126
    %v661 = vmul.f32 %v127, %v127
    %v662 = vmul.f32 %v128, %v128
    %v663 = vmul.f32 %v129, %v129
    %v664 = vmul.f32 %v130, %v130
    %v665 = vmul.f32 %v131, %v131
    %666 = vmatpush.msra.mxu0 %v665
    %667 = vmatpush.msra.mxu0 %v664
    %668 = vmatpush.msra.mxu0 %v663
    %669 = vmatpush.msra.mxu0 %v662
    %670 = vmatpush.msra.mxu0 %v661
    %671 = vmatpush.msra.mxu0 %v660
    %672 = vmatpush.msra.mxu0 %v659
    %673 = vmatpush.msra.mxu0 %v658
    %674 = vmatpush.msra.mxu0 %v657
    %675 = vmatpush.msra.mxu0 %v656
    %676 = vmatpush.msra.mxu0 %v655
    %677 = vmatpush.msra.mxu0 %v654
    %678 = vmatpush.msra.mxu0 %v653
    %679 = vmatpush.msra.mxu0 %v652
    %680 = vmatpush.msra.mxu0 %v651
    %681 = vmatpush.msra.mxu0 %v650
    %682 = vmatmul.f32.gmra.mxu0 %v148
    %v683 = vpop.f32.mrf.mxu0
    %v684 = vadd.f32 0.0, %v683
    %685 = vmatmul.f32.gmra.mxu0 %v149
    %v686 = vpop.f32.mrf.mxu0
    %v687 = vadd.f32 0.0, %v686
    %688 = vmatmul.f32.gmra.mxu0 %v150
    %v689 = vpop.f32.mrf.mxu0
    %v690 = vadd.f32 0.0, %v689
    %691 = vmatmul.f32.gmra.mxu0 %v151
    %v692 = vpop.f32.mrf.mxu0
    %v693 = vadd.f32 0.0, %v692
    %694 = vmatmul.f32.gmra.mxu0 %v152
    %v695 = vpop.f32.mrf.mxu0
    %v696 = vadd.f32 0.0, %v695
    %697 = vmatmul.f32.gmra.mxu0 %v153
    %v698 = vpop.f32.mrf.mxu0
    %v699 = vadd.f32 0.0, %v698
    %700 = vmatmul.f32.gmra.mxu0 %v154
    %v701 = vpop.f32.mrf.mxu0
    %v702 = vadd.f32 0.0, %v701
    %703 = vmatmul.f32.gmra.mxu0 %v155
    %v704 = vpop.f32.mrf.mxu0
    %v705 = vadd.f32 0.0, %v704
    %706 = vmatmul.f32.gmra.mxu0 %v156
    %v707 = vpop.f32.mrf.mxu0
    %v708 = vadd.f32 0.0, %v707
    %709 = vmatmul.f32.gmra.mxu0 %v157
    %v710 = vpop.f32.mrf.mxu0
    %v711 = vadd.f32 0.0, %v710
    %712 = vmatmul.f32.gmra.mxu0 %v158
    %v713 = vpop.f32.mrf.mxu0
    %v714 = vadd.f32 0.0, %v713
    %715 = vmatmul.f32.gmra.mxu0 %v159
    %v716 = vpop.f32.mrf.mxu0
    %v717 = vadd.f32 0.0, %v716
    %718 = vmatmul.f32.gmra.mxu0 %v160
    %v719 = vpop.f32.mrf.mxu0
    %v720 = vadd.f32 0.0, %v719
    %721 = vmatmul.f32.gmra.mxu0 %v161
    %v722 = vpop.f32.mrf.mxu0
    %v723 = vadd.f32 0.0, %v722
    %724 = vmatmul.f32.gmra.mxu0 %v162
    %v725 = vpop.f32.mrf.mxu0
    %v726 = vadd.f32 0.0, %v725
    %727 = vmatmul.f32.gmra.mxu0 %v163
    %v728 = vpop.f32.mrf.mxu0
    %v729 = vadd.f32 0.0, %v728
    %730 = vdwg.mxu0
    %731 = vmatpush.msra.mxu0 %v179
    %732 = vmatpush.msra.mxu0 %v178
    %733 = vmatpush.msra.mxu0 %v177
    %734 = vmatpush.msra.mxu0 %v176
    %735 = vmatpush.msra.mxu0 %v175
    %736 = vmatpush.msra.mxu0 %v174
    %737 = vmatpush.msra.mxu0 %v173
    %738 = vmatpush.msra.mxu0 %v172
    %739 = vmatpush.msra.mxu0 %v171
    %740 = vmatpush.msra.mxu0 %v170
    %741 = vmatpush.msra.mxu0 %v169
    %742 = vmatpush.msra.mxu0 %v168
    %743 = vmatpush.msra.mxu0 %v167
    %744 = vmatpush.msra.mxu0 %v166
    %745 = vmatpush.msra.mxu0 %v165
    %746 = vmatpush.msra.mxu0 %v164
    %747 = vmatmul.f32.gmra.mxu0 %v684
    %v748 = vpop.f32.mrf.mxu0
    %v749 = vadd.f32 0.0, %v748
    %750 = vmatmul.f32.gmra.mxu0 %v687
    %v751 = vpop.f32.mrf.mxu0
    %v752 = vadd.f32 0.0, %v751
    %753 = vmatmul.f32.gmra.mxu0 %v690
    %v754 = vpop.f32.mrf.mxu0
    %v755 = vadd.f32 0.0, %v754
    %756 = vmatmul.f32.gmra.mxu0 %v693
    %v757 = vpop.f32.mrf.mxu0
    %v758 = vadd.f32 0.0, %v757
    %759 = vmatmul.f32.gmra.mxu0 %v696
    %v760 = vpop.f32.mrf.mxu0
    %v761 = vadd.f32 0.0, %v760
    %762 = vmatmul.f32.gmra.mxu0 %v699
    %v763 = vpop.f32.mrf.mxu0
    %v764 = vadd.f32 0.0, %v763
    %765 = vmatmul.f32.gmra.mxu0 %v702
    %v766 = vpop.f32.mrf.mxu0
    %v767 = vadd.f32 0.0, %v766
    %768 = vmatmul.f32.gmra.mxu0 %v705
    %v769 = vpop.f32.mrf.mxu0
    %v770 = vadd.f32 0.0, %v769
    %771 = vmatmul.f32.gmra.mxu0 %v708
    %v772 = vpop.f32.mrf.mxu0
    %v773 = vadd.f32 0.0, %v772
    %774 = vmatmul.f32.gmra.mxu0 %v711
    %v775 = vpop.f32.mrf.mxu0
    %v776 = vadd.f32 0.0, %v775
    %777 = vmatmul.f32.gmra.mxu0 %v714
    %v778 = vpop.f32.mrf.mxu0
    %v779 = vadd.f32 0.0, %v778
    %780 = vmatmul.f32.gmra.mxu0 %v717
    %v781 = vpop.f32.mrf.mxu0
    %v782 = vadd.f32 0.0, %v781
    %783 = vmatmul.f32.gmra.mxu0 %v720
    %v784 = vpop.f32.mrf.mxu0
    %v785 = vadd.f32 0.0, %v784
    %786 = vmatmul.f32.gmra.mxu0 %v723
    %v787 = vpop.f32.mrf.mxu0
    %v788 = vadd.f32 0.0, %v787
    %789 = vmatmul.f32.gmra.mxu0 %v726
    %v790 = vpop.f32.mrf.mxu0
    %v791 = vadd.f32 0.0, %v790
    %792 = vmatmul.f32.gmra.mxu0 %v729
    %v793 = vpop.f32.mrf.mxu0
    %v794 = vadd.f32 0.0, %v793
    %795 = vdwg.mxu0
    %v796 = vsub.f32 %v749, %v456
    %v797 = vsub.f32 %v752, %v457
    %v798 = vsub.f32 %v755, %v458
    %v799 = vsub.f32 %v758, %v459
    %v800 = vsub.f32 %v761, %v460
    %v801 = vsub.f32 %v764, %v461
    %v802 = vsub.f32 %v767, %v462
    %v803 = vsub.f32 %v770, %v463
    %v804 = vsub.f32 %v773, %v464
    %v805 = vsub.f32 %v776, %v465
    %v806 = vsub.f32 %v779, %v466
    %v807 = vsub.f32 %v782, %v467
    %v808 = vsub.f32 %v785, %v468
    %v809 = vsub.f32 %v788, %v469
    %v810 = vsub.f32 %v791, %v470
    %v811 = vsub.f32 %v794, %v471
    %v812 = vmul.f32 %v132, %v116
    %v813 = vmul.f32 %v133, %v117
    %v814 = vmul.f32 %v134, %v118
    %v815 = vmul.f32 %v135, %v119
    %v816 = vmul.f32 %v136, %v120
    %v817 = vmul.f32 %v137, %v121
    %v818 = vmul.f32 %v138, %v122
    %v819 = vmul.f32 %v139, %v123
    %v820 = vmul.f32 %v140, %v124
    %v821 = vmul.f32 %v141, %v125
    %v822 = vmul.f32 %v142, %v126
    %v823 = vmul.f32 %v143, %v127
    %v824 = vmul.f32 %v144, %v128
    %v825 = vmul.f32 %v145, %v129
    %v826 = vmul.f32 %v146, %v130
    %v827 = vmul.f32 %v147, %v131
    %828 = vmatpush.msra.mxu0 %v827
    %829 = vmatpush.msra.mxu0 %v826
    %830 = vmatpush.msra.mxu0 %v825
    %831 = vmatpush.msra.mxu0 %v824
    %832 = vmatpush.msra.mxu0 %v823
    %833 = vmatpush.msra.mxu0 %v822
    %834 = vmatpush.msra.mxu0 %v821
    %835 = vmatpush.msra.mxu0 %v820
    %836 = vmatpush.msra.mxu0 %v819
    %837 = vmatpush.msra.mxu0 %v818
    %838 = vmatpush.msra.mxu0 %v817
    %839 = vmatpush.msra.mxu0 %v816
    %840 = vmatpush.msra.mxu0 %v815
    %841 = vmatpush.msra.mxu0 %v814
    %842 = vmatpush.msra.mxu0 %v813
    %843 = vmatpush.msra.mxu0 %v812
    %844 = vmatmul.f32.gmra.mxu0 %v148
    %v845 = vpop.f32.mrf.mxu0
    %v846 = vadd.f32 0.0, %v845
    %847 = vmatmul.f32.gmra.mxu0 %v149
    %v848 = vpop.f32.mrf.mxu0
    %v849 = vadd.f32 0.0, %v848
    %850 = vmatmul.f32.gmra.mxu0 %v150
    %v851 = vpop.f32.mrf.mxu0
    %v852 = vadd.f32 0.0, %v851
    %853 = vmatmul.f32.gmra.mxu0 %v151
    %v854 = vpop.f32.mrf.mxu0
    %v855 = vadd.f32 0.0, %v854
    %856 = vmatmul.f32.gmra.mxu0 %v152
    %v857 = vpop.f32.mrf.mxu0
    %v858 = vadd.f32 0.0, %v857
    %859 = vmatmul.f32.gmra.mxu0 %v153
    %v860 = vpop.f32.mrf.mxu0
    %v861 = vadd.f32 0.0, %v860
    %862 = vmatmul.f32.gmra.mxu0 %v154
    %v863 = vpop.f32.mrf.mxu0
    %v864 = vadd.f32 0.0, %v863
    %865 = vmatmul.f32.gmra.mxu0 %v155
    %v866 = vpop.f32.mrf.mxu0
    %v867 = vadd.f32 0.0, %v866
    %868 = vmatmul.f32.gmra.mxu0 %v156
    %v869 = vpop.f32.mrf.mxu0
    %v870 = vadd.f32 0.0, %v869
    %871 = vmatmul.f32.gmra.mxu0 %v157
    %v872 = vpop.f32.mrf.mxu0
    %v873 = vadd.f32 0.0, %v872
    %874 = vmatmul.f32.gmra.mxu0 %v158
    %v875 = vpop.f32.mrf.mxu0
    %v876 = vadd.f32 0.0, %v875
    %877 = vmatmul.f32.gmra.mxu0 %v159
    %v878 = vpop.f32.mrf.mxu0
    %v879 = vadd.f32 0.0, %v878
    %880 = vmatmul.f32.gmra.mxu0 %v160
    %v881 = vpop.f32.mrf.mxu0
    %v882 = vadd.f32 0.0, %v881
    %883 = vmatmul.f32.gmra.mxu0 %v161
    %v884 = vpop.f32.mrf.mxu0
    %v885 = vadd.f32 0.0, %v884
    %886 = vmatmul.f32.gmra.mxu0 %v162
    %v887 = vpop.f32.mrf.mxu0
    %v888 = vadd.f32 0.0, %v887
    %889 = vmatmul.f32.gmra.mxu0 %v163
    %v890 = vpop.f32.mrf.mxu0
    %v891 = vadd.f32 0.0, %v890
    %892 = vdwg.mxu0
    %893 = vmatpush.msra.mxu0 %v179
    %894 = vmatpush.msra.mxu0 %v178
    %895 = vmatpush.msra.mxu0 %v177
    %896 = vmatpush.msra.mxu0 %v176
    %897 = vmatpush.msra.mxu0 %v175
    %898 = vmatpush.msra.mxu0 %v174
    %899 = vmatpush.msra.mxu0 %v173
    %900 = vmatpush.msra.mxu0 %v172
    %901 = vmatpush.msra.mxu0 %v171
    %902 = vmatpush.msra.mxu0 %v170
    %903 = vmatpush.msra.mxu0 %v169
    %904 = vmatpush.msra.mxu0 %v168
    %905 = vmatpush.msra.mxu0 %v167
    %906 = vmatpush.msra.mxu0 %v166
    %907 = vmatpush.msra.mxu0 %v165
    %908 = vmatpush.msra.mxu0 %v164
    %909 = vmatmul.f32.gmra.mxu0 %v846
    %v910 = vpop.f32.mrf.mxu0
    %v911 = vadd.f32 0.0, %v910
    %912 = vmatmul.f32.gmra.mxu0 %v849
    %v913 = vpop.f32.mrf.mxu0
    %v914 = vadd.f32 0.0, %v913
    %915 = vmatmul.f32.gmra.mxu0 %v852
    %v916 = vpop.f32.mrf.mxu0
    %v917 = vadd.f32 0.0, %v916
    %918 = vmatmul.f32.gmra.mxu0 %v855
    %v919 = vpop.f32.mrf.mxu0
    %v920 = vadd.f32 0.0, %v919
    %921 = vmatmul.f32.gmra.mxu0 %v858
    %v922 = vpop.f32.mrf.mxu0
    %v923 = vadd.f32 0.0, %v922
    %924 = vmatmul.f32.gmra.mxu0 %v861
    %v925 = vpop.f32.mrf.mxu0
    %v926 = vadd.f32 0.0, %v925
    %927 = vmatmul.f32.gmra.mxu0 %v864
    %v928 = vpop.f32.mrf.mxu0
    %v929 = vadd.f32 0.0, %v928
    %930 = vmatmul.f32.gmra.mxu0 %v867
    %v931 = vpop.f32.mrf.mxu0
    %v932 = vadd.f32 0.0, %v931
    %933 = vmatmul.f32.gmra.mxu0 %v870
    %v934 = vpop.f32.mrf.mxu0
    %v935 = vadd.f32 0.0, %v934
    %936 = vmatmul.f32.gmra.mxu0 %v873
    %v937 = vpop.f32.mrf.mxu0
    %v938 = vadd.f32 0.0, %v937
    %939 = vmatmul.f32.gmra.mxu0 %v876
    %v940 = vpop.f32.mrf.mxu0
    %v941 = vadd.f32 0.0, %v940
    %942 = vmatmul.f32.gmra.mxu0 %v879
    %v943 = vpop.f32.mrf.mxu0
    %v944 = vadd.f32 0.0, %v943
    %945 = vmatmul.f32.gmra.mxu0 %v882
    %v946 = vpop.f32.mrf.mxu0
    %v947 = vadd.f32 0.0, %v946
    %948 = vmatmul.f32.gmra.mxu0 %v885
    %v949 = vpop.f32.mrf.mxu0
    %v950 = vadd.f32 0.0, %v949
    %951 = vmatmul.f32.gmra.mxu0 %v888
    %v952 = vpop.f32.mrf.mxu0
    %v953 = vadd.f32 0.0, %v952
    %954 = vmatmul.f32.gmra.mxu0 %v891
    %v955 = vpop.f32.mrf.mxu0
    %v956 = vadd.f32 0.0, %v955
    %957 = vdwg.mxu0
    %v958 = vsub.f32 %v911, %v472
    %v959 = vsub.f32 %v914, %v473
    %v960 = vsub.f32 %v917, %v474
    %v961 = vsub.f32 %v920, %v475
    %v962 = vsub.f32 %v923, %v476
    %v963 = vsub.f32 %v926, %v477
    %v964 = vsub.f32 %v929, %v478
    %v965 = vsub.f32 %v932, %v479
    %v966 = vsub.f32 %v935, %v480
    %v967 = vsub.f32 %v938, %v481
    %v968 = vsub.f32 %v941, %v482
    %v969 = vsub.f32 %v944, %v483
    %v970 = vsub.f32 %v947, %v484
    %v971 = vsub.f32 %v950, %v485
    %v972 = vsub.f32 %v953, %v486
    %v973 = vsub.f32 %v956, %v487
    %v974 = vmul.f32 %v472, 2.0
    %v975 = vmul.f32 %v473, 2.0
    %v976 = vmul.f32 %v474, 2.0
    %v977 = vmul.f32 %v475, 2.0
    %v978 = vmul.f32 %v476, 2.0
    %v979 = vmul.f32 %v477, 2.0
    %v980 = vmul.f32 %v478, 2.0
    %v981 = vmul.f32 %v479, 2.0
    %v982 = vmul.f32 %v480, 2.0
    %v983 = vmul.f32 %v481, 2.0
    %v984 = vmul.f32 %v482, 2.0
    %v985 = vmul.f32 %v483, 2.0
    %v986 = vmul.f32 %v484, 2.0
    %v987 = vmul.f32 %v485, 2.0
    %v988 = vmul.f32 %v486, 2.0
    %v989 = vmul.f32 %v487, 2.0
    %v990 = vadd.f32 %v974, 0.0001
    %v991 = vadd.f32 %v975, 0.0001
    %v992 = vadd.f32 %v976, 0.0001
    %v993 = vadd.f32 %v977, 0.0001
    %v994 = vadd.f32 %v978, 0.0001
    %v995 = vadd.f32 %v979, 0.0001
    %v996 = vadd.f32 %v980, 0.0001
    %v997 = vadd.f32 %v981, 0.0001
    %v998 = vadd.f32 %v982, 0.0001
    %v999 = vadd.f32 %v983, 0.0001
    %v1000 = vadd.f32 %v984, 0.0001
    %v1001 = vadd.f32 %v985, 0.0001
    %v1002 = vadd.f32 %v986, 0.0001
    %v1003 = vadd.f32 %v987, 0.0001
    %v1004 = vadd.f32 %v988, 0.0001
    %v1005 = vadd.f32 %v989, 0.0001
    %v1006 = vmul.f32 %v958, 2.0
    %v1007 = vmul.f32 %v959, 2.0
    %v1008 = vmul.f32 %v960, 2.0
    %v1009 = vmul.f32 %v961, 2.0
    %v1010 = vmul.f32 %v962, 2.0
    %v1011 = vmul.f32 %v963, 2.0
    %v1012 = vmul.f32 %v964, 2.0
    %v1013 = vmul.f32 %v965, 2.0
    %v1014 = vmul.f32 %v966, 2.0
    %v1015 = vmul.f32 %v967, 2.0
    %v1016 = vmul.f32 %v968, 2.0
    %v1017 = vmul.f32 %v969, 2.0
    %v1018 = vmul.f32 %v970, 2.0
    %v1019 = vmul.f32 %v971, 2.0
    %v1020 = vmul.f32 %v972, 2.0
    %v1021 = vmul.f32 %v973, 2.0
    %v1022 = vadd.f32 %v1006, 0.0009
    %v1023 = vadd.f32 %v1007, 0.0009
    %v1024 = vadd.f32 %v1008, 0.0009
    %v1025 = vadd.f32 %v1009, 0.0009
    %v1026 = vadd.f32 %v1010, 0.0009
    %v1027 = vadd.f32 %v1011, 0.0009
    %v1028 = vadd.f32 %v1012, 0.0009
    %v1029 = vadd.f32 %v1013, 0.0009
    %v1030 = vadd.f32 %v1014, 0.0009
    %v1031 = vadd.f32 %v1015, 0.0009
    %v1032 = vadd.f32 %v1016, 0.0009
    %v1033 = vadd.f32 %v1017, 0.0009
    %v1034 = vadd.f32 %v1018, 0.0009
    %v1035 = vadd.f32 %v1019, 0.0009
    %v1036 = vadd.f32 %v1020, 0.0009
    %v1037 = vadd.f32 %v1021, 0.0009
    %v1038 = vmul.f32 %v990, %v1022
    %v1039 = vmul.f32 %v991, %v1023
    %v1040 = vmul.f32 %v992, %v1024
    %v1041 = vmul.f32 %v993, %v1025
    %v1042 = vmul.f32 %v994, %v1026
    %v1043 = vmul.f32 %v995, %v1027
    %v1044 = vmul.f32 %v996, %v1028
    %v1045 = vmul.f32 %v997, %v1029
    %v1046 = vmul.f32 %v998, %v1030
    %v1047 = vmul.f32 %v999, %v1031
    %v1048 = vmul.f32 %v1000, %v1032
    %v1049 = vmul.f32 %v1001, %v1033
    %v1050 = vmul.f32 %v1002, %v1034
    %v1051 = vmul.f32 %v1003, %v1035
    %v1052 = vmul.f32 %v1004, %v1036
    %v1053 = vmul.f32 %v1005, %v1037
    %v1054 = vadd.f32 %v440, %v456
    %v1055 = vadd.f32 %v441, %v457
    %v1056 = vadd.f32 %v442, %v458
    %v1057 = vadd.f32 %v443, %v459
    %v1058 = vadd.f32 %v444, %v460
    %v1059 = vadd.f32 %v445, %v461
    %v1060 = vadd.f32 %v446, %v462
    %v1061 = vadd.f32 %v447, %v463
    %v1062 = vadd.f32 %v448, %v464
    %v1063 = vadd.f32 %v449, %v465
    %v1064 = vadd.f32 %v450, %v466
    %v1065 = vadd.f32 %v451, %v467
    %v1066 = vadd.f32 %v452, %v468
    %v1067 = vadd.f32 %v453, %v469
    %v1068 = vadd.f32 %v454, %v470
    %v1069 = vadd.f32 %v455, %v471
    %v1070 = vadd.f32 %v1054, 0.0001
    %v1071 = vadd.f32 %v1055, 0.0001
    %v1072 = vadd.f32 %v1056, 0.0001
    %v1073 = vadd.f32 %v1057, 0.0001
    %v1074 = vadd.f32 %v1058, 0.0001
    %v1075 = vadd.f32 %v1059, 0.0001
    %v1076 = vadd.f32 %v1060, 0.0001
    %v1077 = vadd.f32 %v1061, 0.0001
    %v1078 = vadd.f32 %v1062, 0.0001
    %v1079 = vadd.f32 %v1063, 0.0001
    %v1080 = vadd.f32 %v1064, 0.0001
    %v1081 = vadd.f32 %v1065, 0.0001
    %v1082 = vadd.f32 %v1066, 0.0001
    %v1083 = vadd.f32 %v1067, 0.0001
    %v1084 = vadd.f32 %v1068, 0.0001
    %v1085 = vadd.f32 %v1069, 0.0001
    %v1086 = vadd.f32 %v634, %v796
    %v1087 = vadd.f32 %v635, %v797
    %v1088 = vadd.f32 %v636, %v798
    %v1089 = vadd.f32 %v637, %v799
    %v1090 = vadd.f32 %v638, %v800
    %v1091 = vadd.f32 %v639, %v801
    %v1092 = vadd.f32 %v640, %v802
    %v1093 = vadd.f32 %v641, %v803
    %v1094 = vadd.f32 %v642, %v804
    %v1095 = vadd.f32 %v643, %v805
    %v1096 = vadd.f32 %v644, %v806
    %v1097 = vadd.f32 %v645, %v807
    %v1098 = vadd.f32 %v646, %v808
    %v1099 = vadd.f32 %v647, %v809
    %v1100 = vadd.f32 %v648, %v810
    %v1101 = vadd.f32 %v649, %v811
    %v1102 = vadd.f32 %v1086, 0.0009
    %v1103 = vadd.f32 %v1087, 0.0009
    %v1104 = vadd.f32 %v1088, 0.0009
    %v1105 = vadd.f32 %v1089, 0.0009
    %v1106 = vadd.f32 %v1090, 0.0009
    %v1107 = vadd.f32 %v1091, 0.0009
    %v1108 = vadd.f32 %v1092, 0.0009
    %v1109 = vadd.f32 %v1093, 0.0009
    %v1110 = vadd.f32 %v1094, 0.0009
    %v1111 = vadd.f32 %v1095, 0.0009
    %v1112 = vadd.f32 %v1096, 0.0009
    %v1113 = vadd.f32 %v1097, 0.0009
    %v1114 = vadd.f32 %v1098, 0.0009
    %v1115 = vadd.f32 %v1099, 0.0009
    %v1116 = vadd.f32 %v1100, 0.0009
    %v1117 = vadd.f32 %v1101, 0.0009
    %v1118 = vmul.f32 %v1070, %v1102
    %v1119 = vmul.f32 %v1071, %v1103
    %v1120 = vmul.f32 %v1072, %v1104
    %v1121 = vmul.f32 %v1073, %v1105
    %v1122 = vmul.f32 %v1074, %v1106
    %v1123 = vmul.f32 %v1075, %v1107
    %v1124 = vmul.f32 %v1076, %v1108
    %v1125 = vmul.f32 %v1077, %v1109
    %v1126 = vmul.f32 %v1078, %v1110
    %v1127 = vmul.f32 %v1079, %v1111
    %v1128 = vmul.f32 %v1080, %v1112
    %v1129 = vmul.f32 %v1081, %v1113
    %v1130 = vmul.f32 %v1082, %v1114
    %v1131 = vmul.f32 %v1083, %v1115
    %v1132 = vmul.f32 %v1084, %v1116
    %v1133 = vmul.f32 %v1085, %v1117
    %v1134 = vrcp.pop %v1118
    %v1135 = vmul.f32 %v1118, %v1134
    %v1136 = vsub.f32 1.0, %v1135
    %v1137 = vmul.f32 %v1134, %v1136
    %v1138 = vadd.f32 %v1134, %v1137
    %vm1139 = vweird.f32 %v1118
    %vm1140 = vweird.f32 %v1134
    %vm1141 = vmor %vm1139, %vm1140
    %v1142 = vsel %vm1141, %v1134, %v1138
    %v1143 = vand.u32 2147483647, %v1118
    %vm1144 = vcmp.eq.f32.partialorder %v1143, 8.507059e+37
    %v1145 = vand.u32 %v1118, 2147483648
    %v1146 = vor.u32 1.1754944e-38, %v1145
    %v1147 = vsel %vm1144, %v1146, %v1142
    %v1148 = vmul.f32 %v1038, %v1147
    %v1149 = vrcp.pop %v1119
    %v1150 = vmul.f32 %v1119, %v1149
    %v1151 = vsub.f32 1.0, %v1150
    %v1152 = vmul.f32 %v1149, %v1151
    %v1153 = vadd.f32 %v1149, %v1152
    %vm1154 = vweird.f32 %v1119
    %vm1155 = vweird.f32 %v1149
    %vm1156 = vmor %vm1154, %vm1155
    %v1157 = vsel %vm1156, %v1149, %v1153
    %v1158 = vand.u32 2147483647, %v1119
    %vm1159 = vcmp.eq.f32.partialorder %v1158, 8.507059e+37
    %v1160 = vand.u32 %v1119, 2147483648
    %v1161 = vor.u32 1.1754944e-38, %v1160
    %v1162 = vsel %vm1159, %v1161, %v1157
    %v1163 = vmul.f32 %v1039, %v1162
    %v1164 = vrcp.pop %v1120
    %v1165 = vmul.f32 %v1120, %v1164
    %v1166 = vsub.f32 1.0, %v1165
    %v1167 = vmul.f32 %v1164, %v1166
    %v1168 = vadd.f32 %v1164, %v1167
    %vm1169 = vweird.f32 %v1120
    %vm1170 = vweird.f32 %v1164
    %vm1171 = vmor %vm1169, %vm1170
    %v1172 = vsel %vm1171, %v1164, %v1168
    %v1173 = vand.u32 2147483647, %v1120
    %vm1174 = vcmp.eq.f32.partialorder %v1173, 8.507059e+37
    %v1175 = vand.u32 %v1120, 2147483648
    %v1176 = vor.u32 1.1754944e-38, %v1175
    %v1177 = vsel %vm1174, %v1176, %v1172
    %v1178 = vmul.f32 %v1040, %v1177
    %v1179 = vrcp.pop %v1121
    %v1180 = vmul.f32 %v1121, %v1179
    %v1181 = vsub.f32 1.0, %v1180
    %v1182 = vmul.f32 %v1179, %v1181
    %v1183 = vadd.f32 %v1179, %v1182
    %vm1184 = vweird.f32 %v1121
    %vm1185 = vweird.f32 %v1179
    %vm1186 = vmor %vm1184, %vm1185
    %v1187 = vsel %vm1186, %v1179, %v1183
    %v1188 = vand.u32 2147483647, %v1121
    %vm1189 = vcmp.eq.f32.partialorder %v1188, 8.507059e+37
    %v1190 = vand.u32 %v1121, 2147483648
    %v1191 = vor.u32 1.1754944e-38, %v1190
    %v1192 = vsel %vm1189, %v1191, %v1187
    %v1193 = vmul.f32 %v1041, %v1192
    %v1194 = vrcp.pop %v1122
    %v1195 = vmul.f32 %v1122, %v1194
    %v1196 = vsub.f32 1.0, %v1195
    %v1197 = vmul.f32 %v1194, %v1196
    %v1198 = vadd.f32 %v1194, %v1197
    %vm1199 = vweird.f32 %v1122
    %vm1200 = vweird.f32 %v1194
    %vm1201 = vmor %vm1199, %vm1200
    %v1202 = vsel %vm1201, %v1194, %v1198
    %v1203 = vand.u32 2147483647, %v1122
    %vm1204 = vcmp.eq.f32.partialorder %v1203, 8.507059e+37
    %v1205 = vand.u32 %v1122, 2147483648
    %v1206 = vor.u32 1.1754944e-38, %v1205
    %v1207 = vsel %vm1204, %v1206, %v1202
    %v1208 = vmul.f32 %v1042, %v1207
    %v1209 = vrcp.pop %v1123
    %v1210 = vmul.f32 %v1123, %v1209
    %v1211 = vsub.f32 1.0, %v1210
    %v1212 = vmul.f32 %v1209, %v1211
    %v1213 = vadd.f32 %v1209, %v1212
    %vm1214 = vweird.f32 %v1123
    %vm1215 = vweird.f32 %v1209
    %vm1216 = vmor %vm1214, %vm1215
    %v1217 = vsel %vm1216, %v1209, %v1213
    %v1218 = vand.u32 2147483647, %v1123
    %vm1219 = vcmp.eq.f32.partialorder %v1218, 8.507059e+37
    %v1220 = vand.u32 %v1123, 2147483648
    %v1221 = vor.u32 1.1754944e-38, %v1220
    %v1222 = vsel %vm1219, %v1221, %v1217
    %v1223 = vmul.f32 %v1043, %v1222
    %v1224 = vrcp.pop %v1124
    %v1225 = vmul.f32 %v1124, %v1224
    %v1226 = vsub.f32 1.0, %v1225
    %v1227 = vmul.f32 %v1224, %v1226
    %v1228 = vadd.f32 %v1224, %v1227
    %vm1229 = vweird.f32 %v1124
    %vm1230 = vweird.f32 %v1224
    %vm1231 = vmor %vm1229, %vm1230
    %v1232 = vsel %vm1231, %v1224, %v1228
    %v1233 = vand.u32 2147483647, %v1124
    %vm1234 = vcmp.eq.f32.partialorder %v1233, 8.507059e+37
    %v1235 = vand.u32 %v1124, 2147483648
    %v1236 = vor.u32 1.1754944e-38, %v1235
    %v1237 = vsel %vm1234, %v1236, %v1232
    %v1238 = vmul.f32 %v1044, %v1237
    %v1239 = vrcp.pop %v1125
    %v1240 = vmul.f32 %v1125, %v1239
    %v1241 = vsub.f32 1.0, %v1240
    %v1242 = vmul.f32 %v1239, %v1241
    %v1243 = vadd.f32 %v1239, %v1242
    %vm1244 = vweird.f32 %v1125
    %vm1245 = vweird.f32 %v1239
    %vm1246 = vmor %vm1244, %vm1245
    %v1247 = vsel %vm1246, %v1239, %v1243
    %v1248 = vand.u32 2147483647, %v1125
    %vm1249 = vcmp.eq.f32.partialorder %v1248, 8.507059e+37
    %v1250 = vand.u32 %v1125, 2147483648
    %v1251 = vor.u32 1.1754944e-38, %v1250
    %v1252 = vsel %vm1249, %v1251, %v1247
    %v1253 = vmul.f32 %v1045, %v1252
    %v1254 = vrcp.pop %v1126
    %v1255 = vmul.f32 %v1126, %v1254
    %v1256 = vsub.f32 1.0, %v1255
    %v1257 = vmul.f32 %v1254, %v1256
    %v1258 = vadd.f32 %v1254, %v1257
    %vm1259 = vweird.f32 %v1126
    %vm1260 = vweird.f32 %v1254
    %vm1261 = vmor %vm1259, %vm1260
    %v1262 = vsel %vm1261, %v1254, %v1258
    %v1263 = vand.u32 2147483647, %v1126
    %vm1264 = vcmp.eq.f32.partialorder %v1263, 8.507059e+37
    %v1265 = vand.u32 %v1126, 2147483648
    %v1266 = vor.u32 1.1754944e-38, %v1265
    %v1267 = vsel %vm1264, %v1266, %v1262
    %v1268 = vmul.f32 %v1046, %v1267
    %v1269 = vrcp.pop %v1127
    %v1270 = vmul.f32 %v1127, %v1269
    %v1271 = vsub.f32 1.0, %v1270
    %v1272 = vmul.f32 %v1269, %v1271
    %v1273 = vadd.f32 %v1269, %v1272
    %vm1274 = vweird.f32 %v1127
    %vm1275 = vweird.f32 %v1269
    %vm1276 = vmor %vm1274, %vm1275
    %v1277 = vsel %vm1276, %v1269, %v1273
    %v1278 = vand.u32 2147483647, %v1127
    %vm1279 = vcmp.eq.f32.partialorder %v1278, 8.507059e+37
    %v1280 = vand.u32 %v1127, 2147483648
    %v1281 = vor.u32 1.1754944e-38, %v1280
    %v1282 = vsel %vm1279, %v1281, %v1277
    %v1283 = vmul.f32 %v1047, %v1282
    %v1284 = vrcp.pop %v1128
    %v1285 = vmul.f32 %v1128, %v1284
    %v1286 = vsub.f32 1.0, %v1285
    %v1287 = vmul.f32 %v1284, %v1286
    %v1288 = vadd.f32 %v1284, %v1287
    %vm1289 = vweird.f32 %v1128
    %vm1290 = vweird.f32 %v1284
    %vm1291 = vmor %vm1289, %vm1290
    %v1292 = vsel %vm1291, %v1284, %v1288
    %v1293 = vand.u32 2147483647, %v1128
    %vm1294 = vcmp.eq.f32.partialorder %v1293, 8.507059e+37
    %v1295 = vand.u32 %v1128, 2147483648
    %v1296 = vor.u32 1.1754944e-38, %v1295
    %v1297 = vsel %vm1294, %v1296, %v1292
    %v1298 = vmul.f32 %v1048, %v1297
    %v1299 = vrcp.pop %v1129
    %v1300 = vmul.f32 %v1129, %v1299
    %v1301 = vsub.f32 1.0, %v1300
    %v1302 = vmul.f32 %v1299, %v1301
    %v1303 = vadd.f32 %v1299, %v1302
    %vm1304 = vweird.f32 %v1129
    %vm1305 = vweird.f32 %v1299
    %vm1306 = vmor %vm1304, %vm1305
    %v1307 = vsel %vm1306, %v1299, %v1303
    %v1308 = vand.u32 2147483647, %v1129
    %vm1309 = vcmp.eq.f32.partialorder %v1308, 8.507059e+37
    %v1310 = vand.u32 %v1129, 2147483648
    %v1311 = vor.u32 1.1754944e-38, %v1310
    %v1312 = vsel %vm1309, %v1311, %v1307
    %v1313 = vmul.f32 %v1049, %v1312
    %v1314 = vrcp.pop %v1130
    %v1315 = vmul.f32 %v1130, %v1314
    %v1316 = vsub.f32 1.0, %v1315
    %v1317 = vmul.f32 %v1314, %v1316
    %v1318 = vadd.f32 %v1314, %v1317
    %vm1319 = vweird.f32 %v1130
    %vm1320 = vweird.f32 %v1314
    %vm1321 = vmor %vm1319, %vm1320
    %v1322 = vsel %vm1321, %v1314, %v1318
    %v1323 = vand.u32 2147483647, %v1130
    %vm1324 = vcmp.eq.f32.partialorder %v1323, 8.507059e+37
    %v1325 = vand.u32 %v1130, 2147483648
    %v1326 = vor.u32 1.1754944e-38, %v1325
    %v1327 = vsel %vm1324, %v1326, %v1322
    %v1328 = vmul.f32 %v1050, %v1327
    %v1329 = vrcp.pop %v1131
    %v1330 = vmul.f32 %v1131, %v1329
    %v1331 = vsub.f32 1.0, %v1330
    %v1332 = vmul.f32 %v1329, %v1331
    %v1333 = vadd.f32 %v1329, %v1332
    %vm1334 = vweird.f32 %v1131
    %vm1335 = vweird.f32 %v1329
    %vm1336 = vmor %vm1334, %vm1335
    %v1337 = vsel %vm1336, %v1329, %v1333
    %v1338 = vand.u32 2147483647, %v1131
    %vm1339 = vcmp.eq.f32.partialorder %v1338, 8.507059e+37
    %v1340 = vand.u32 %v1131, 2147483648
    %v1341 = vor.u32 1.1754944e-38, %v1340
    %v1342 = vsel %vm1339, %v1341, %v1337
    %v1343 = vmul.f32 %v1051, %v1342
    %v1344 = vrcp.pop %v1132
    %v1345 = vmul.f32 %v1132, %v1344
    %v1346 = vsub.f32 1.0, %v1345
    %v1347 = vmul.f32 %v1344, %v1346
    %v1348 = vadd.f32 %v1344, %v1347
    %vm1349 = vweird.f32 %v1132
    %vm1350 = vweird.f32 %v1344
    %vm1351 = vmor %vm1349, %vm1350
    %v1352 = vsel %vm1351, %v1344, %v1348
    %v1353 = vand.u32 2147483647, %v1132
    %vm1354 = vcmp.eq.f32.partialorder %v1353, 8.507059e+37
    %v1355 = vand.u32 %v1132, 2147483648
    %v1356 = vor.u32 1.1754944e-38, %v1355
    %v1357 = vsel %vm1354, %v1356, %v1352
    %v1358 = vmul.f32 %v1052, %v1357
    %v1359 = vrcp.pop %v1133
    %v1360 = vmul.f32 %v1133, %v1359
    %v1361 = vsub.f32 1.0, %v1360
    %v1362 = vmul.f32 %v1359, %v1361
    %v1363 = vadd.f32 %v1359, %v1362
    %vm1364 = vweird.f32 %v1133
    %vm1365 = vweird.f32 %v1359
    %vm1366 = vmor %vm1364, %vm1365
    %v1367 = vsel %vm1366, %v1359, %v1363
    %v1368 = vand.u32 2147483647, %v1133
    %vm1369 = vcmp.eq.f32.partialorder %v1368, 8.507059e+37
    %v1370 = vand.u32 %v1133, 2147483648
    %v1371 = vor.u32 1.1754944e-38, %v1370
    %v1372 = vsel %vm1369, %v1371, %v1367
    %v1373 = vmul.f32 %v1053, %v1372
    %v1374 = vlaneseq
    %v1375 = vand.u32 %v1374, 127
    %vm1376 = vcmp.lt.s32.totalorder %v1375, 16
    %v1377 = vld [vmem:[%s4] sm:$0xff]
    %v1378 = vld [vmem:[%s4 + $0x8] sm:$0xff]
    %v1379 = vld [vmem:[%s4 + $0x10] sm:$0xff]
    %v1380 = vld [vmem:[%s4 + $0x18] sm:$0xff]
    %v1381 = vld [vmem:[%s4 + $0x20] sm:$0xff]
    %v1382 = vld [vmem:[%s4 + $0x28] sm:$0xff]
    %v1383 = vld [vmem:[%s4 + $0x30] sm:$0xff]
    %v1384 = vld [vmem:[%s4 + $0x38] sm:$0xff]
    %v1385 = vld [vmem:[%s4 + $0x40] sm:$0xff]
    %v1386 = vld [vmem:[%s4 + $0x48] sm:$0xff]
    %v1387 = vld [vmem:[%s4 + $0x50] sm:$0xff]
    %v1388 = vld [vmem:[%s4 + $0x58] sm:$0xff]
    %v1389 = vld [vmem:[%s4 + $0x60] sm:$0xff]
    %v1390 = vld [vmem:[%s4 + $0x68] sm:$0xff]
    %v1391 = vld [vmem:[%s4 + $0x70] sm:$0xff]
    %v1392 = vld [vmem:[%s4 + $0x78] sm:$0xff]
    %1394 = vset.pattern.permute.xlu0 0
    %1395 = vperm.xlu0 %1394, %v1377
    %v1396 = vpop.permute.xlu0 %1395
    %1399 = vset.pattern.permute.xlu0 0
    %1400 = vperm.xlu0 %1399, %v1378
    %v1401 = vpop.permute.xlu0 %1400
    %1404 = vset.pattern.permute.xlu0 0
    %1405 = vperm.xlu0 %1404, %v1379
    %v1406 = vpop.permute.xlu0 %1405
    %1409 = vset.pattern.permute.xlu0 0
    %1410 = vperm.xlu0 %1409, %v1380
    %v1411 = vpop.permute.xlu0 %1410
    %1414 = vset.pattern.permute.xlu0 0
    %1415 = vperm.xlu0 %1414, %v1381
    %v1416 = vpop.permute.xlu0 %1415
    %1419 = vset.pattern.permute.xlu0 0
    %1420 = vperm.xlu0 %1419, %v1382
    %v1421 = vpop.permute.xlu0 %1420
    %1424 = vset.pattern.permute.xlu0 0
    %1425 = vperm.xlu0 %1424, %v1383
    %v1426 = vpop.permute.xlu0 %1425
    %1429 = vset.pattern.permute.xlu0 0
    %1430 = vperm.xlu0 %1429, %v1384
    %v1431 = vpop.permute.xlu0 %1430
    %1434 = vset.pattern.permute.xlu0 0
    %1435 = vperm.xlu0 %1434, %v1385
    %v1436 = vpop.permute.xlu0 %1435
    %1439 = vset.pattern.permute.xlu0 0
    %1440 = vperm.xlu0 %1439, %v1386
    %v1441 = vpop.permute.xlu0 %1440
    %1444 = vset.pattern.permute.xlu0 0
    %1445 = vperm.xlu0 %1444, %v1387
    %v1446 = vpop.permute.xlu0 %1445
    %1449 = vset.pattern.permute.xlu0 0
    %1450 = vperm.xlu0 %1449, %v1388
    %v1451 = vpop.permute.xlu0 %1450
    %1454 = vset.pattern.permute.xlu0 0
    %1455 = vperm.xlu0 %1454, %v1389
    %v1456 = vpop.permute.xlu0 %1455
    %1459 = vset.pattern.permute.xlu0 0
    %1460 = vperm.xlu0 %1459, %v1390
    %v1461 = vpop.permute.xlu0 %1460
    %1464 = vset.pattern.permute.xlu0 0
    %1465 = vperm.xlu0 %1464, %v1391
    %v1466 = vpop.permute.xlu0 %1465
    %1469 = vset.pattern.permute.xlu0 0
    %1470 = vperm.xlu0 %1469, %v1392
    %v1471 = vpop.permute.xlu0 %1470
    %v1473 = vmul.f32 %v1148, %v1396
    %v1474 = vmul.f32 %v1163, %v1401
    %v1475 = vmul.f32 %v1178, %v1406
    %v1476 = vmul.f32 %v1193, %v1411
    %v1477 = vmul.f32 %v1208, %v1416
    %v1478 = vmul.f32 %v1223, %v1421
    %v1479 = vmul.f32 %v1238, %v1426
    %v1480 = vmul.f32 %v1253, %v1431
    %v1481 = vmul.f32 %v1268, %v1436
    %v1482 = vmul.f32 %v1283, %v1441
    %v1483 = vmul.f32 %v1298, %v1446
    %v1484 = vmul.f32 %v1313, %v1451
    %v1485 = vmul.f32 %v1328, %v1456
    %v1486 = vmul.f32 %v1343, %v1461
    %v1487 = vmul.f32 %v1358, %v1466
    %v1488 = vmul.f32 %v1373, %v1471
    %v1489 = vsel %vm1376, %v1473, 0.0
    %v1490 = vsel %vm1376, %v1474, 0.0
    %v1491 = vsel %vm1376, %v1475, 0.0
    %v1492 = vsel %vm1376, %v1476, 0.0
    %v1493 = vsel %vm1376, %v1477, 0.0
    %v1494 = vsel %vm1376, %v1478, 0.0
    %v1495 = vsel %vm1376, %v1479, 0.0
    %v1496 = vsel %vm1376, %v1480, 0.0
    %v1497 = vsel %vm1376, %v1481, 0.0
    %v1498 = vsel %vm1376, %v1482, 0.0
    %v1499 = vsel %vm1376, %v1483, 0.0
    %v1500 = vsel %vm1376, %v1484, 0.0
    %v1501 = vsel %vm1376, %v1485, 0.0
    %v1502 = vsel %vm1376, %v1486, 0.0
    %v1503 = vsel %vm1376, %v1487, 0.0
    %v1504 = vsel %vm1376, %v1488, 0.0
    %v1505 = vadd.f32 %v1489, %v1490
    %v1506 = vadd.f32 %v1505, %v1491
    %v1507 = vadd.f32 %v1506, %v1492
    %v1508 = vadd.f32 %v1507, %v1493
    %v1509 = vadd.f32 %v1508, %v1494
    %v1510 = vadd.f32 %v1509, %v1495
    %v1511 = vadd.f32 %v1510, %v1496
    %v1512 = vadd.f32 %v1511, %v1497
    %v1513 = vadd.f32 %v1512, %v1498
    %v1514 = vadd.f32 %v1513, %v1499
    %v1515 = vadd.f32 %v1514, %v1500
    %v1516 = vadd.f32 %v1515, %v1501
    %v1517 = vadd.f32 %v1516, %v1502
    %v1518 = vadd.f32 %v1517, %v1503
    %v1519 = vadd.f32 %v1518, %v1504
    %v1520 = vrot.slane %v1519, 4
    %v1521 = vadd.f32 %v1519, %v1520
    %v1522 = vrot.slane %v1521, 2
    %v1523 = vadd.f32 %v1521, %v1522
    %v1524 = vrot.slane %v1523, 1
    %v1525 = vadd.f32 %v1523, %v1524
    %1526 = vst [vmem:[#allocation8] sm:$0x1] %v1525
    // Predicated region
    $region34: #{tpu_custom_call.1} parent=1 // pred_check
      _
    $region35: #{tpu_custom_call.1} parent=1 // pred_check_branch
      %1528 = sbr.rel (0) target = $region37
    $region36: #{tpu_custom_call.1} parent=1 // pred_region
      %1530 = vsyncadd [#allocation4], 0
      %s1532 = sshll.u32 [#allocation8], 4
      %s1533 = int_to_ptr.vmem [resolvable:$true] %s1532
      %s1534 = sshll.u32 %s5, 4
      %s1535 = int_to_ptr.hbm [resolvable:$true] %s1534
      %1537 = dma.vmem_to_hbm [thread:$0]  %s1533, 16, %s1535, [#allocation4]
    $region37: #{tpu_custom_call.1} parent=1 // pred_fallthru
      _
    // Predicated region
    $region38: #{tpu_custom_call.1} parent=1 // pred_check
      _
    $region39: #{tpu_custom_call.1} parent=1 // pred_check_branch
      %1539 = sbr.rel (0) target = $region41
    $region40: #{tpu_custom_call.1} parent=1 // pred_region
      %1541 = dma.done [#allocation4], 16
    $region41: #{tpu_custom_call.1} parent=1 // pred_fallthru
      _
    %1542 = vsyncpa [#allocation3], 1
    %1543 = vsyncpa [#allocation6], 1
    %1544 = vsyncpa [#allocation4], 1

</llo_original>
